<compile_context>
chip_gen: v7x
topology: tpu7x:2x2x1
jax: 0.10.0
libtpu: 0.0.40
codegen_flags: <defaults>
</compile_context>

<pallas_src>
import functools
import math

import jax
import jax.numpy as jnp
from jax import lax
from jax.experimental import pallas as pl
from jax.experimental.pallas import tpu as pltpu  # noqa: F401  (TPU backend)


# ----------------------------------------------------------------------------
# Packed-parameter layout
# ----------------------------------------------------------------------------
def _round_up(n, m):
    return (n + m - 1) // m * m


def _layer_layout(input_dim, hidden_dim, num_layers):
    """Row offsets of [w_ih_t | w_hh_t | bias] per layer in the packed slab."""
    H = hidden_dim
    offs = []
    row = 0
    for l in range(num_layers):
        d_in = input_dim if l == 0 else H
        d_in_pad = _round_up(d_in, 8)
        h_pad = _round_up(H, 8)
        offs.append({"ih": row, "d_in": d_in,
                     "hh": row + d_in_pad,
                     "b": row + d_in_pad + h_pad})
        row += d_in_pad + h_pad + 8  # bias row padded to a full sublane group
    return offs, row


# ----------------------------------------------------------------------------
# Fused kernel
# ----------------------------------------------------------------------------
def _make_fused_kernel(num_layers, T, B, D, H, O, layer_offs):
    f32 = jnp.float32
    H4 = 4 * H

    def kernel(x_ref, lstm_ref, fc_ref, out_ref):
        # ---- load packed weights once; static (aligned) slices ------------
        lstm = lstm_ref[...]                              # (rows, 4H)
        w_ih, w_hh, bias = [], [], []
        for l in range(num_layers):
            o = layer_offs[l]
            d_in = D if l == 0 else H
            w_ih.append(lstm[o["ih"]:o["ih"] + d_in, :])  # (d_in, 4H)
            w_hh.append(lstm[o["hh"]:o["hh"] + H, :])     # (H, 4H)
            bias.append(lstm[o["b"]:o["b"] + 1, :])       # (1, 4H)

        # Hoisted lane mask: lanes [2H, 3H) hold the tanh ("g") gate.
        lane = lax.broadcasted_iota(jnp.int32, (B, H4), 1)
        g_mask = jnp.logical_and(lane >= 2 * H, lane < 3 * H)

        def activate(g):
            # Single slab transcendental: sigmoid(x) = 0.5 * (1 + tanh(x/2)).
            gs = jnp.where(g_mask, g, 0.5 * g)
            th = jnp.tanh(gs)
            return jnp.where(g_mask, th, 0.5 * (th + 1.0))

        # ---- layer 0: hoist input projection over all time steps ----------
        # Repack x once into a t-major contiguous (T*B, D) slab (off-chain).
        x = x_ref[...]                                    # (B, T, D)
        x_tm = jnp.concatenate([x[:, t, :] for t in range(T)], axis=0)
        xg_full = jnp.dot(x_tm, w_ih[0], preferred_element_type=f32) + bias[0]
        xg = [xg_full[t * B:(t + 1) * B, :] for t in range(T)]   # (B, 4H) each

        # ---- recurrences: wavefront over (layer, time) ---------------------
        h_last = None
        for l in range(num_layers):
            h = jnp.zeros((B, H), f32)
            c = jnp.zeros((B, H), f32)
            next_xg = []
            for t in range(T):                            # fully unrolled
                g = xg[t] + jnp.dot(h, w_hh[l], preferred_element_type=f32)
                act = activate(g)
                i_g = act[:, 0 * H:1 * H]
                f_g = act[:, 1 * H:2 * H]
                g_g = act[:, 2 * H:3 * H]
                o_g = act[:, 3 * H:4 * H]
                c = f_g * c + i_g * g_g
                h = o_g * jnp.tanh(c)
                if l + 1 < num_layers:
                    # Next layer's precomputed gates as soon as h_t exists,
                    # so layer l+1 step t only waits for layer l step t.
                    next_xg.append(jnp.dot(h, w_ih[l + 1],
                                           preferred_element_type=f32)
                                   + bias[l + 1])
            xg = next_xg
            h_last = h

        # ---- FC head on the last time step of the last layer ---------------
        fc = fc_ref[...]                                  # (H+1, O)
        out_ref[...] = (jnp.dot(h_last, fc[0:H, :], preferred_element_type=f32)
                        + fc[H:H + 1, :])

    return kernel


# ----------------------------------------------------------------------------
# Wrapper
# ----------------------------------------------------------------------------
@functools.partial(jax.jit, static_argnames=("hidden_dim", "num_layers"))
def lstm_model_forward(x, lstm_pack, fc_pack, *, hidden_dim, num_layers):
    """x: (batch, seq, input_dim) batch_first.  Returns (batch, output_dim)."""
    B, T, D = x.shape
    H = hidden_dim
    O = fc_pack.shape[1]
    layer_offs, _ = _layer_layout(D, H, num_layers)
    kernel = _make_fused_kernel(num_layers, T, B, D, H, O, layer_offs)

    def full_spec(a):
        nd = a.ndim
        return pl.BlockSpec(a.shape, lambda nd=nd: (0,) * nd)

    return pl.pallas_call(
        kernel,
        out_shape=jax.ShapeDtypeStruct((B, O), jnp.float32),
        grid=(),
        in_specs=[full_spec(x), full_spec(lstm_pack), full_spec(fc_pack)],
        out_specs=pl.BlockSpec((B, O), lambda: (0, 0)),
    )(x, lstm_pack, fc_pack)


# ----------------------------------------------------------------------------
# Deterministic parameter init (PyTorch-style U(-1/sqrt(H), 1/sqrt(H)))
# + host-side packing into lane-dense slabs.
# ----------------------------------------------------------------------------
def init_params(key, input_dim, hidden_dim, num_layers, output_dim):
    H = hidden_dim
    bound = 1.0 / math.sqrt(H)
    layers = []
    for l in range(num_layers):
        d_in = input_dim if l == 0 else H
        key, k1, k2, k3, k4 = jax.random.split(key, 5)
        layers.append({
            "w_ih": jax.random.uniform(k1, (4 * H, d_in), jnp.float32, -bound, bound),
            "w_hh": jax.random.uniform(k2, (4 * H, H), jnp.float32, -bound, bound),
            "b_ih": jax.random.uniform(k3, (4 * H,), jnp.float32, -bound, bound),
            "b_hh": jax.random.uniform(k4, (4 * H,), jnp.float32, -bound, bound),
        })
    key, k5, k6 = jax.random.split(key, 3)
    fc_w = jax.random.uniform(k5, (output_dim, H), jnp.float32, -bound, bound)
    fc_b = jax.random.uniform(k6, (output_dim,), jnp.float32, -bound, bound)

    # Pack [w_ih_t | w_hh_t | b_ih+b_hh] of all layers into one (rows, 4H) slab.
    offs, total_rows = _layer_layout(input_dim, H, num_layers)
    lstm_pack = jnp.zeros((total_rows, 4 * H), jnp.float32)
    for l, lyr in enumerate(layers):
        o = offs[l]
        lstm_pack = lstm_pack.at[o["ih"]:o["ih"] + o["d_in"], :].set(lyr["w_ih"].T)
        lstm_pack = lstm_pack.at[o["hh"]:o["hh"] + H, :].set(lyr["w_hh"].T)
        lstm_pack = lstm_pack.at[o["b"], :].set(lyr["b_ih"] + lyr["b_hh"])

    fc_pack = jnp.zeros((H + 1, output_dim), jnp.float32)
    fc_pack = fc_pack.at[:H, :].set(fc_w.T)
    fc_pack = fc_pack.at[H, :].set(fc_b)

    return {"layers": layers, "lstm_pack": lstm_pack, "fc_pack": fc_pack,
            "fc_w": fc_w, "fc_b": fc_b}


# ----------------------------------------------------------------------------
# Pure-JAX reference (matches PyTorch nn.LSTM + nn.Linear semantics)
# ----------------------------------------------------------------------------
def reference_forward(x, params):
    B = x.shape[0]
    h_seq = x  # (B, T, D)
    for layer in params["layers"]:
        H = layer["w_hh"].shape[1]
        w_ih, w_hh = layer["w_ih"], layer["w_hh"]
        b = layer["b_ih"] + layer["b_hh"]

        def step(carry, x_t):
            h, c = carry
            gates = x_t @ w_ih.T + h @ w_hh.T + b
            i = jax.nn.sigmoid(gates[:, 0 * H:1 * H])
            f = jax.nn.sigmoid(gates[:, 1 * H:2 * H])
            g = jnp.tanh(gates[:, 2 * H:3 * H])
            o = jax.nn.sigmoid(gates[:, 3 * H:4 * H])
            c = f * c + i * g
            h = o * jnp.tanh(c)
            return (h, c), h

        h0 = jnp.zeros((B, H), jnp.float32)
        c0 = jnp.zeros((B, H), jnp.float32)
        _, hs = lax.scan(step, (h0, c0), jnp.transpose(h_seq, (1, 0, 2)))
        h_seq = jnp.transpose(hs, (1, 0, 2))
    h_last = h_seq[:, -1, :]
    return h_last @ params["fc_w"].T + params["fc_b"]


# ----------------------------------------------------------------------------
if __name__ == "__main__":
    batch, seq, input_dim, hidden_dim, num_layers, output_dim = 2, 8, 16, 32, 2, 4

    key = jax.random.PRNGKey(0)
    key, xk = jax.random.split(key)
    x = jax.random.normal(xk, (batch, seq, input_dim), jnp.float32)

    params = init_params(key, input_dim, hidden_dim, num_layers, output_dim)

    out = lstm_model_forward(x, params["lstm_pack"], params["fc_pack"],
                             hidden_dim=hidden_dim, num_layers=num_layers)
    out = jax.block_until_ready(out)

    ref = reference_forward(x, params)
    assert out.shape == (batch, output_dim)
    assert jnp.allclose(out, ref, atol=1e-4, rtol=1e-4), "Pallas LSTM mismatch vs reference"

    print("KERNEL_OK")
</pallas_src>

<mosaic_0001>
module attributes {stable_mosaic.version = 11 : i64} {
  func.func @kernel(%arg0: memref<2x8x16xf32, #tpu.memory_space<vmem>>, %arg1: memref<128x128xf32, #tpu.memory_space<vmem>>, %arg2: memref<33x4xf32, #tpu.memory_space<vmem>>, %arg3: memref<2x4xf32, #tpu.memory_space<vmem>>) attributes {dimension_semantics = [], scalar_prefetch = 0 : i64, scratch_operands = 0 : i64, tpu.core_type = #tpu.core_type<tc>} {
    %c0 = arith.constant 0 : index
    %c0_0 = arith.constant 0 : index
    %0 = vector.load %arg1[%c0, %c0_0] : memref<128x128xf32, #tpu.memory_space<vmem>>, vector<128x128xf32>
    %1 = vector.extract_strided_slice %0 {offsets = [0, 0], sizes = [16, 128], strides = [1, 1]} : vector<128x128xf32> to vector<16x128xf32>
    %2 = vector.extract_strided_slice %0 {offsets = [16, 0], sizes = [32, 128], strides = [1, 1]} : vector<128x128xf32> to vector<32x128xf32>
    %3 = vector.extract_strided_slice %0 {offsets = [48, 0], sizes = [1, 128], strides = [1, 1]} : vector<128x128xf32> to vector<1x128xf32>
    %4 = vector.extract_strided_slice %0 {offsets = [56, 0], sizes = [32, 128], strides = [1, 1]} : vector<128x128xf32> to vector<32x128xf32>
    %5 = vector.extract_strided_slice %0 {offsets = [88, 0], sizes = [32, 128], strides = [1, 1]} : vector<128x128xf32> to vector<32x128xf32>
    %6 = vector.extract_strided_slice %0 {offsets = [120, 0], sizes = [1, 128], strides = [1, 1]} : vector<128x128xf32> to vector<1x128xf32>
    %7 = tpu.iota {dimensions = array<i32: 1>} : vector<2x128xi32>
    %c64_i32 = arith.constant 64 : i32
    %8 = vector.broadcast %c64_i32 : i32 to vector<2x128xi32>
    %9 = arith.cmpi sge, %7, %8 : vector<2x128xi32>
    %c96_i32 = arith.constant 96 : i32
    %10 = vector.broadcast %c96_i32 : i32 to vector<2x128xi32>
    %11 = arith.cmpi slt, %7, %10 : vector<2x128xi32>
    %12 = arith.andi %9, %11 : vector<2x128xi1>
    %c0_1 = arith.constant 0 : index
    %c0_2 = arith.constant 0 : index
    %c0_3 = arith.constant 0 : index
    %13 = vector.load %arg0[%c0_1, %c0_2, %c0_3] : memref<2x8x16xf32, #tpu.memory_space<vmem>>, vector<2x8x16xf32>
    %14 = vector.extract_strided_slice %13 {offsets = [0, 0, 0], sizes = [2, 1, 16], strides = [1, 1, 1]} : vector<2x8x16xf32> to vector<2x1x16xf32>
    %15 = vector.shape_cast %14 : vector<2x1x16xf32> to vector<2x16xf32>
    %16 = vector.extract_strided_slice %13 {offsets = [0, 1, 0], sizes = [2, 1, 16], strides = [1, 1, 1]} : vector<2x8x16xf32> to vector<2x1x16xf32>
    %17 = vector.shape_cast %16 : vector<2x1x16xf32> to vector<2x16xf32>
    %18 = vector.extract_strided_slice %13 {offsets = [0, 2, 0], sizes = [2, 1, 16], strides = [1, 1, 1]} : vector<2x8x16xf32> to vector<2x1x16xf32>
    %19 = vector.shape_cast %18 : vector<2x1x16xf32> to vector<2x16xf32>
    %20 = vector.extract_strided_slice %13 {offsets = [0, 3, 0], sizes = [2, 1, 16], strides = [1, 1, 1]} : vector<2x8x16xf32> to vector<2x1x16xf32>
    %21 = vector.shape_cast %20 : vector<2x1x16xf32> to vector<2x16xf32>
    %22 = vector.extract_strided_slice %13 {offsets = [0, 4, 0], sizes = [2, 1, 16], strides = [1, 1, 1]} : vector<2x8x16xf32> to vector<2x1x16xf32>
    %23 = vector.shape_cast %22 : vector<2x1x16xf32> to vector<2x16xf32>
    %24 = vector.extract_strided_slice %13 {offsets = [0, 5, 0], sizes = [2, 1, 16], strides = [1, 1, 1]} : vector<2x8x16xf32> to vector<2x1x16xf32>
    %25 = vector.shape_cast %24 : vector<2x1x16xf32> to vector<2x16xf32>
    %26 = vector.extract_strided_slice %13 {offsets = [0, 6, 0], sizes = [2, 1, 16], strides = [1, 1, 1]} : vector<2x8x16xf32> to vector<2x1x16xf32>
    %27 = vector.shape_cast %26 : vector<2x1x16xf32> to vector<2x16xf32>
    %28 = vector.extract_strided_slice %13 {offsets = [0, 7, 0], sizes = [2, 1, 16], strides = [1, 1, 1]} : vector<2x8x16xf32> to vector<2x1x16xf32>
    %29 = vector.shape_cast %28 : vector<2x1x16xf32> to vector<2x16xf32>
    %30 = tpu.concatenate %15, %17, %19, %21, %23, %25, %27, %29 in 0 : vector<2x16xf32>, vector<2x16xf32>, vector<2x16xf32>, vector<2x16xf32>, vector<2x16xf32>, vector<2x16xf32>, vector<2x16xf32>, vector<2x16xf32> -> vector<16x16xf32>
    %cst = arith.constant dense<0.000000e+00> : vector<16x128xf32>
    %31 = tpu.matmul %30, %1, %cst {dimension_numbers = #tpu.dot_dimension_numbers<[1], [0], [0], [1], [0, 0, 1, 1], [], []>} : vector<16x16xf32>, vector<16x128xf32>, vector<16x128xf32> -> vector<16x128xf32>
    %32 = vector.broadcast %3 : vector<1x128xf32> to vector<16x128xf32>
    %33 = arith.addf %31, %32 : vector<16x128xf32>
    %34 = vector.extract_strided_slice %33 {offsets = [0, 0], sizes = [2, 128], strides = [1, 1]} : vector<16x128xf32> to vector<2x128xf32>
    %35 = vector.extract_strided_slice %33 {offsets = [2, 0], sizes = [2, 128], strides = [1, 1]} : vector<16x128xf32> to vector<2x128xf32>
    %36 = vector.extract_strided_slice %33 {offsets = [4, 0], sizes = [2, 128], strides = [1, 1]} : vector<16x128xf32> to vector<2x128xf32>
    %37 = vector.extract_strided_slice %33 {offsets = [6, 0], sizes = [2, 128], strides = [1, 1]} : vector<16x128xf32> to vector<2x128xf32>
    %38 = vector.extract_strided_slice %33 {offsets = [8, 0], sizes = [2, 128], strides = [1, 1]} : vector<16x128xf32> to vector<2x128xf32>
    %39 = vector.extract_strided_slice %33 {offsets = [10, 0], sizes = [2, 128], strides = [1, 1]} : vector<16x128xf32> to vector<2x128xf32>
    %40 = vector.extract_strided_slice %33 {offsets = [12, 0], sizes = [2, 128], strides = [1, 1]} : vector<16x128xf32> to vector<2x128xf32>
    %41 = vector.extract_strided_slice %33 {offsets = [14, 0], sizes = [2, 128], strides = [1, 1]} : vector<16x128xf32> to vector<2x128xf32>
    %cst_4 = arith.constant 0.000000e+00 : f32
    %42 = vector.broadcast %cst_4 : f32 to vector<2x32xf32>
    %cst_5 = arith.constant 0.000000e+00 : f32
    %43 = vector.broadcast %cst_5 : f32 to vector<2x32xf32>
    %cst_6 = arith.constant dense<0.000000e+00> : vector<2x128xf32>
    %44 = tpu.matmul %42, %2, %cst_6 {dimension_numbers = #tpu.dot_dimension_numbers<[1], [0], [0], [1], [0, 0, 1, 1], [], []>} : vector<2x32xf32>, vector<32x128xf32>, vector<2x128xf32> -> vector<2x128xf32>
    %45 = arith.addf %34, %44 : vector<2x128xf32>
    %cst_7 = arith.constant 5.000000e-01 : f32
    %46 = vector.broadcast %cst_7 : f32 to vector<2x128xf32>
    %47 = arith.mulf %46, %45 : vector<2x128xf32>
    %48 = arith.select %12, %45, %47 : vector<2x128xi1>, vector<2x128xf32>
    %49 = math.tanh %48 : vector<2x128xf32>
    %cst_8 = arith.constant 1.000000e+00 : f32
    %50 = vector.broadcast %cst_8 : f32 to vector<2x128xf32>
    %51 = arith.addf %49, %50 : vector<2x128xf32>
    %cst_9 = arith.constant 5.000000e-01 : f32
    %52 = vector.broadcast %cst_9 : f32 to vector<2x128xf32>
    %53 = arith.mulf %52, %51 : vector<2x128xf32>
    %54 = arith.select %12, %49, %53 : vector<2x128xi1>, vector<2x128xf32>
    %55 = vector.extract_strided_slice %54 {offsets = [0, 0], sizes = [2, 32], strides = [1, 1]} : vector<2x128xf32> to vector<2x32xf32>
    %56 = vector.extract_strided_slice %54 {offsets = [0, 32], sizes = [2, 32], strides = [1, 1]} : vector<2x128xf32> to vector<2x32xf32>
    %57 = vector.extract_strided_slice %54 {offsets = [0, 64], sizes = [2, 32], strides = [1, 1]} : vector<2x128xf32> to vector<2x32xf32>
    %58 = vector.extract_strided_slice %54 {offsets = [0, 96], sizes = [2, 32], strides = [1, 1]} : vector<2x128xf32> to vector<2x32xf32>
    %59 = arith.mulf %56, %43 : vector<2x32xf32>
    %60 = arith.mulf %55, %57 : vector<2x32xf32>
    %61 = arith.addf %59, %60 : vector<2x32xf32>
    %62 = math.tanh %61 : vector<2x32xf32>
    %63 = arith.mulf %58, %62 : vector<2x32xf32>
    %cst_10 = arith.constant dense<0.000000e+00> : vector<2x128xf32>
    %64 = tpu.matmul %63, %4, %cst_10 {dimension_numbers = #tpu.dot_dimension_numbers<[1], [0], [0], [1], [0, 0, 1, 1], [], []>} : vector<2x32xf32>, vector<32x128xf32>, vector<2x128xf32> -> vector<2x128xf32>
    %65 = vector.broadcast %6 : vector<1x128xf32> to vector<2x128xf32>
    %66 = arith.addf %64, %65 : vector<2x128xf32>
    %cst_11 = arith.constant dense<0.000000e+00> : vector<2x128xf32>
    %67 = tpu.matmul %63, %2, %cst_11 {dimension_numbers = #tpu.dot_dimension_numbers<[1], [0], [0], [1], [0, 0, 1, 1], [], []>} : vector<2x32xf32>, vector<32x128xf32>, vector<2x128xf32> -> vector<2x128xf32>
    %68 = arith.addf %35, %67 : vector<2x128xf32>
    %cst_12 = arith.constant 5.000000e-01 : f32
    %69 = vector.broadcast %cst_12 : f32 to vector<2x128xf32>
    %70 = arith.mulf %69, %68 : vector<2x128xf32>
    %71 = arith.select %12, %68, %70 : vector<2x128xi1>, vector<2x128xf32>
    %72 = math.tanh %71 : vector<2x128xf32>
    %cst_13 = arith.constant 1.000000e+00 : f32
    %73 = vector.broadcast %cst_13 : f32 to vector<2x128xf32>
    %74 = arith.addf %72, %73 : vector<2x128xf32>
    %cst_14 = arith.constant 5.000000e-01 : f32
    %75 = vector.broadcast %cst_14 : f32 to vector<2x128xf32>
    %76 = arith.mulf %75, %74 : vector<2x128xf32>
    %77 = arith.select %12, %72, %76 : vector<2x128xi1>, vector<2x128xf32>
    %78 = vector.extract_strided_slice %77 {offsets = [0, 0], sizes = [2, 32], strides = [1, 1]} : vector<2x128xf32> to vector<2x32xf32>
    %79 = vector.extract_strided_slice %77 {offsets = [0, 32], sizes = [2, 32], strides = [1, 1]} : vector<2x128xf32> to vector<2x32xf32>
    %80 = vector.extract_strided_slice %77 {offsets = [0, 64], sizes = [2, 32], strides = [1, 1]} : vector<2x128xf32> to vector<2x32xf32>
    %81 = vector.extract_strided_slice %77 {offsets = [0, 96], sizes = [2, 32], strides = [1, 1]} : vector<2x128xf32> to vector<2x32xf32>
    %82 = arith.mulf %79, %61 : vector<2x32xf32>
    %83 = arith.mulf %78, %80 : vector<2x32xf32>
    %84 = arith.addf %82, %83 : vector<2x32xf32>
    %85 = math.tanh %84 : vector<2x32xf32>
    %86 = arith.mulf %81, %85 : vector<2x32xf32>
    %cst_15 = arith.constant dense<0.000000e+00> : vector<2x128xf32>
    %87 = tpu.matmul %86, %4, %cst_15 {dimension_numbers = #tpu.dot_dimension_numbers<[1], [0], [0], [1], [0, 0, 1, 1], [], []>} : vector<2x32xf32>, vector<32x128xf32>, vector<2x128xf32> -> vector<2x128xf32>
    %88 = vector.broadcast %6 : vector<1x128xf32> to vector<2x128xf32>
    %89 = arith.addf %87, %88 : vector<2x128xf32>
    %cst_16 = arith.constant dense<0.000000e+00> : vector<2x128xf32>
    %90 = tpu.matmul %86, %2, %cst_16 {dimension_numbers = #tpu.dot_dimension_numbers<[1], [0], [0], [1], [0, 0, 1, 1], [], []>} : vector<2x32xf32>, vector<32x128xf32>, vector<2x128xf32> -> vector<2x128xf32>
    %91 = arith.addf %36, %90 : vector<2x128xf32>
    %cst_17 = arith.constant 5.000000e-01 : f32
    %92 = vector.broadcast %cst_17 : f32 to vector<2x128xf32>
    %93 = arith.mulf %92, %91 : vector<2x128xf32>
    %94 = arith.select %12, %91, %93 : vector<2x128xi1>, vector<2x128xf32>
    %95 = math.tanh %94 : vector<2x128xf32>
    %cst_18 = arith.constant 1.000000e+00 : f32
    %96 = vector.broadcast %cst_18 : f32 to vector<2x128xf32>
    %97 = arith.addf %95, %96 : vector<2x128xf32>
    %cst_19 = arith.constant 5.000000e-01 : f32
    %98 = vector.broadcast %cst_19 : f32 to vector<2x128xf32>
    %99 = arith.mulf %98, %97 : vector<2x128xf32>
    %100 = arith.select %12, %95, %99 : vector<2x128xi1>, vector<2x128xf32>
    %101 = vector.extract_strided_slice %100 {offsets = [0, 0], sizes = [2, 32], strides = [1, 1]} : vector<2x128xf32> to vector<2x32xf32>
    %102 = vector.extract_strided_slice %100 {offsets = [0, 32], sizes = [2, 32], strides = [1, 1]} : vector<2x128xf32> to vector<2x32xf32>
    %103 = vector.extract_strided_slice %100 {offsets = [0, 64], sizes = [2, 32], strides = [1, 1]} : vector<2x128xf32> to vector<2x32xf32>
    %104 = vector.extract_strided_slice %100 {offsets = [0, 96], sizes = [2, 32], strides = [1, 1]} : vector<2x128xf32> to vector<2x32xf32>
    %105 = arith.mulf %102, %84 : vector<2x32xf32>
    %106 = arith.mulf %101, %103 : vector<2x32xf32>
    %107 = arith.addf %105, %106 : vector<2x32xf32>
    %108 = math.tanh %107 : vector<2x32xf32>
    %109 = arith.mulf %104, %108 : vector<2x32xf32>
    %cst_20 = arith.constant dense<0.000000e+00> : vector<2x128xf32>
    %110 = tpu.matmul %109, %4, %cst_20 {dimension_numbers = #tpu.dot_dimension_numbers<[1], [0], [0], [1], [0, 0, 1, 1], [], []>} : vector<2x32xf32>, vector<32x128xf32>, vector<2x128xf32> -> vector<2x128xf32>
    %111 = vector.broadcast %6 : vector<1x128xf32> to vector<2x128xf32>
    %112 = arith.addf %110, %111 : vector<2x128xf32>
    %cst_21 = arith.constant dense<0.000000e+00> : vector<2x128xf32>
    %113 = tpu.matmul %109, %2, %cst_21 {dimension_numbers = #tpu.dot_dimension_numbers<[1], [0], [0], [1], [0, 0, 1, 1], [], []>} : vector<2x32xf32>, vector<32x128xf32>, vector<2x128xf32> -> vector<2x128xf32>
    %114 = arith.addf %37, %113 : vector<2x128xf32>
    %cst_22 = arith.constant 5.000000e-01 : f32
    %115 = vector.broadcast %cst_22 : f32 to vector<2x128xf32>
    %116 = arith.mulf %115, %114 : vector<2x128xf32>
    %117 = arith.select %12, %114, %116 : vector<2x128xi1>, vector<2x128xf32>
    %118 = math.tanh %117 : vector<2x128xf32>
    %cst_23 = arith.constant 1.000000e+00 : f32
    %119 = vector.broadcast %cst_23 : f32 to vector<2x128xf32>
    %120 = arith.addf %118, %119 : vector<2x128xf32>
    %cst_24 = arith.constant 5.000000e-01 : f32
    %121 = vector.broadcast %cst_24 : f32 to vector<2x128xf32>
    %122 = arith.mulf %121, %120 : vector<2x128xf32>
    %123 = arith.select %12, %118, %122 : vector<2x128xi1>, vector<2x128xf32>
    %124 = vector.extract_strided_slice %123 {offsets = [0, 0], sizes = [2, 32], strides = [1, 1]} : vector<2x128xf32> to vector<2x32xf32>
    %125 = vector.extract_strided_slice %123 {offsets = [0, 32], sizes = [2, 32], strides = [1, 1]} : vector<2x128xf32> to vector<2x32xf32>
    %126 = vector.extract_strided_slice %123 {offsets = [0, 64], sizes = [2, 32], strides = [1, 1]} : vector<2x128xf32> to vector<2x32xf32>
    %127 = vector.extract_strided_slice %123 {offsets = [0, 96], sizes = [2, 32], strides = [1, 1]} : vector<2x128xf32> to vector<2x32xf32>
    %128 = arith.mulf %125, %107 : vector<2x32xf32>
    %129 = arith.mulf %124, %126 : vector<2x32xf32>
    %130 = arith.addf %128, %129 : vector<2x32xf32>
    %131 = math.tanh %130 : vector<2x32xf32>
    %132 = arith.mulf %127, %131 : vector<2x32xf32>
    %cst_25 = arith.constant dense<0.000000e+00> : vector<2x128xf32>
    %133 = tpu.matmul %132, %4, %cst_25 {dimension_numbers = #tpu.dot_dimension_numbers<[1], [0], [0], [1], [0, 0, 1, 1], [], []>} : vector<2x32xf32>, vector<32x128xf32>, vector<2x128xf32> -> vector<2x128xf32>
    %134 = vector.broadcast %6 : vector<1x128xf32> to vector<2x128xf32>
    %135 = arith.addf %133, %134 : vector<2x128xf32>
    %cst_26 = arith.constant dense<0.000000e+00> : vector<2x128xf32>
    %136 = tpu.matmul %132, %2, %cst_26 {dimension_numbers = #tpu.dot_dimension_numbers<[1], [0], [0], [1], [0, 0, 1, 1], [], []>} : vector<2x32xf32>, vector<32x128xf32>, vector<2x128xf32> -> vector<2x128xf32>
    %137 = arith.addf %38, %136 : vector<2x128xf32>
    %cst_27 = arith.constant 5.000000e-01 : f32
    %138 = vector.broadcast %cst_27 : f32 to vector<2x128xf32>
    %139 = arith.mulf %138, %137 : vector<2x128xf32>
    %140 = arith.select %12, %137, %139 : vector<2x128xi1>, vector<2x128xf32>
    %141 = math.tanh %140 : vector<2x128xf32>
    %cst_28 = arith.constant 1.000000e+00 : f32
    %142 = vector.broadcast %cst_28 : f32 to vector<2x128xf32>
    %143 = arith.addf %141, %142 : vector<2x128xf32>
    %cst_29 = arith.constant 5.000000e-01 : f32
    %144 = vector.broadcast %cst_29 : f32 to vector<2x128xf32>
    %145 = arith.mulf %144, %143 : vector<2x128xf32>
    %146 = arith.select %12, %141, %145 : vector<2x128xi1>, vector<2x128xf32>
    %147 = vector.extract_strided_slice %146 {offsets = [0, 0], sizes = [2, 32], strides = [1, 1]} : vector<2x128xf32> to vector<2x32xf32>
    %148 = vector.extract_strided_slice %146 {offsets = [0, 32], sizes = [2, 32], strides = [1, 1]} : vector<2x128xf32> to vector<2x32xf32>
    %149 = vector.extract_strided_slice %146 {offsets = [0, 64], sizes = [2, 32], strides = [1, 1]} : vector<2x128xf32> to vector<2x32xf32>
    %150 = vector.extract_strided_slice %146 {offsets = [0, 96], sizes = [2, 32], strides = [1, 1]} : vector<2x128xf32> to vector<2x32xf32>
    %151 = arith.mulf %148, %130 : vector<2x32xf32>
    %152 = arith.mulf %147, %149 : vector<2x32xf32>
    %153 = arith.addf %151, %152 : vector<2x32xf32>
    %154 = math.tanh %153 : vector<2x32xf32>
    %155 = arith.mulf %150, %154 : vector<2x32xf32>
    %cst_30 = arith.constant dense<0.000000e+00> : vector<2x128xf32>
    %156 = tpu.matmul %155, %4, %cst_30 {dimension_numbers = #tpu.dot_dimension_numbers<[1], [0], [0], [1], [0, 0, 1, 1], [], []>} : vector<2x32xf32>, vector<32x128xf32>, vector<2x128xf32> -> vector<2x128xf32>
    %157 = vector.broadcast %6 : vector<1x128xf32> to vector<2x128xf32>
    %158 = arith.addf %156, %157 : vector<2x128xf32>
    %cst_31 = arith.constant dense<0.000000e+00> : vector<2x128xf32>
    %159 = tpu.matmul %155, %2, %cst_31 {dimension_numbers = #tpu.dot_dimension_numbers<[1], [0], [0], [1], [0, 0, 1, 1], [], []>} : vector<2x32xf32>, vector<32x128xf32>, vector<2x128xf32> -> vector<2x128xf32>
    %160 = arith.addf %39, %159 : vector<2x128xf32>
    %cst_32 = arith.constant 5.000000e-01 : f32
    %161 = vector.broadcast %cst_32 : f32 to vector<2x128xf32>
    %162 = arith.mulf %161, %160 : vector<2x128xf32>
    %163 = arith.select %12, %160, %162 : vector<2x128xi1>, vector<2x128xf32>
    %164 = math.tanh %163 : vector<2x128xf32>
    %cst_33 = arith.constant 1.000000e+00 : f32
    %165 = vector.broadcast %cst_33 : f32 to vector<2x128xf32>
    %166 = arith.addf %164, %165 : vector<2x128xf32>
    %cst_34 = arith.constant 5.000000e-01 : f32
    %167 = vector.broadcast %cst_34 : f32 to vector<2x128xf32>
    %168 = arith.mulf %167, %166 : vector<2x128xf32>
    %169 = arith.select %12, %164, %168 : vector<2x128xi1>, vector<2x128xf32>
    %170 = vector.extract_strided_slice %169 {offsets = [0, 0], sizes = [2, 32], strides = [1, 1]} : vector<2x128xf32> to vector<2x32xf32>
    %171 = vector.extract_strided_slice %169 {offsets = [0, 32], sizes = [2, 32], strides = [1, 1]} : vector<2x128xf32> to vector<2x32xf32>
    %172 = vector.extract_strided_slice %169 {offsets = [0, 64], sizes = [2, 32], strides = [1, 1]} : vector<2x128xf32> to vector<2x32xf32>
    %173 = vector.extract_strided_slice %169 {offsets = [0, 96], sizes = [2, 32], strides = [1, 1]} : vector<2x128xf32> to vector<2x32xf32>
    %174 = arith.mulf %171, %153 : vector<2x32xf32>
    %175 = arith.mulf %170, %172 : vector<2x32xf32>
    %176 = arith.addf %174, %175 : vector<2x32xf32>
    %177 = math.tanh %176 : vector<2x32xf32>
    %178 = arith.mulf %173, %177 : vector<2x32xf32>
    %cst_35 = arith.constant dense<0.000000e+00> : vector<2x128xf32>
    %179 = tpu.matmul %178, %4, %cst_35 {dimension_numbers = #tpu.dot_dimension_numbers<[1], [0], [0], [1], [0, 0, 1, 1], [], []>} : vector<2x32xf32>, vector<32x128xf32>, vector<2x128xf32> -> vector<2x128xf32>
    %180 = vector.broadcast %6 : vector<1x128xf32> to vector<2x128xf32>
    %181 = arith.addf %179, %180 : vector<2x128xf32>
    %cst_36 = arith.constant dense<0.000000e+00> : vector<2x128xf32>
    %182 = tpu.matmul %178, %2, %cst_36 {dimension_numbers = #tpu.dot_dimension_numbers<[1], [0], [0], [1], [0, 0, 1, 1], [], []>} : vector<2x32xf32>, vector<32x128xf32>, vector<2x128xf32> -> vector<2x128xf32>
    %183 = arith.addf %40, %182 : vector<2x128xf32>
    %cst_37 = arith.constant 5.000000e-01 : f32
    %184 = vector.broadcast %cst_37 : f32 to vector<2x128xf32>
    %185 = arith.mulf %184, %183 : vector<2x128xf32>
    %186 = arith.select %12, %183, %185 : vector<2x128xi1>, vector<2x128xf32>
    %187 = math.tanh %186 : vector<2x128xf32>
    %cst_38 = arith.constant 1.000000e+00 : f32
    %188 = vector.broadcast %cst_38 : f32 to vector<2x128xf32>
    %189 = arith.addf %187, %188 : vector<2x128xf32>
    %cst_39 = arith.constant 5.000000e-01 : f32
    %190 = vector.broadcast %cst_39 : f32 to vector<2x128xf32>
    %191 = arith.mulf %190, %189 : vector<2x128xf32>
    %192 = arith.select %12, %187, %191 : vector<2x128xi1>, vector<2x128xf32>
    %193 = vector.extract_strided_slice %192 {offsets = [0, 0], sizes = [2, 32], strides = [1, 1]} : vector<2x128xf32> to vector<2x32xf32>
    %194 = vector.extract_strided_slice %192 {offsets = [0, 32], sizes = [2, 32], strides = [1, 1]} : vector<2x128xf32> to vector<2x32xf32>
    %195 = vector.extract_strided_slice %192 {offsets = [0, 64], sizes = [2, 32], strides = [1, 1]} : vector<2x128xf32> to vector<2x32xf32>
    %196 = vector.extract_strided_slice %192 {offsets = [0, 96], sizes = [2, 32], strides = [1, 1]} : vector<2x128xf32> to vector<2x32xf32>
    %197 = arith.mulf %194, %176 : vector<2x32xf32>
    %198 = arith.mulf %193, %195 : vector<2x32xf32>
    %199 = arith.addf %197, %198 : vector<2x32xf32>
    %200 = math.tanh %199 : vector<2x32xf32>
    %201 = arith.mulf %196, %200 : vector<2x32xf32>
    %cst_40 = arith.constant dense<0.000000e+00> : vector<2x128xf32>
    %202 = tpu.matmul %201, %4, %cst_40 {dimension_numbers = #tpu.dot_dimension_numbers<[1], [0], [0], [1], [0, 0, 1, 1], [], []>} : vector<2x32xf32>, vector<32x128xf32>, vector<2x128xf32> -> vector<2x128xf32>
    %203 = vector.broadcast %6 : vector<1x128xf32> to vector<2x128xf32>
    %204 = arith.addf %202, %203 : vector<2x128xf32>
    %cst_41 = arith.constant dense<0.000000e+00> : vector<2x128xf32>
    %205 = tpu.matmul %201, %2, %cst_41 {dimension_numbers = #tpu.dot_dimension_numbers<[1], [0], [0], [1], [0, 0, 1, 1], [], []>} : vector<2x32xf32>, vector<32x128xf32>, vector<2x128xf32> -> vector<2x128xf32>
    %206 = arith.addf %41, %205 : vector<2x128xf32>
    %cst_42 = arith.constant 5.000000e-01 : f32
    %207 = vector.broadcast %cst_42 : f32 to vector<2x128xf32>
    %208 = arith.mulf %207, %206 : vector<2x128xf32>
    %209 = arith.select %12, %206, %208 : vector<2x128xi1>, vector<2x128xf32>
    %210 = math.tanh %209 : vector<2x128xf32>
    %cst_43 = arith.constant 1.000000e+00 : f32
    %211 = vector.broadcast %cst_43 : f32 to vector<2x128xf32>
    %212 = arith.addf %210, %211 : vector<2x128xf32>
    %cst_44 = arith.constant 5.000000e-01 : f32
    %213 = vector.broadcast %cst_44 : f32 to vector<2x128xf32>
    %214 = arith.mulf %213, %212 : vector<2x128xf32>
    %215 = arith.select %12, %210, %214 : vector<2x128xi1>, vector<2x128xf32>
    %216 = vector.extract_strided_slice %215 {offsets = [0, 0], sizes = [2, 32], strides = [1, 1]} : vector<2x128xf32> to vector<2x32xf32>
    %217 = vector.extract_strided_slice %215 {offsets = [0, 32], sizes = [2, 32], strides = [1, 1]} : vector<2x128xf32> to vector<2x32xf32>
    %218 = vector.extract_strided_slice %215 {offsets = [0, 64], sizes = [2, 32], strides = [1, 1]} : vector<2x128xf32> to vector<2x32xf32>
    %219 = vector.extract_strided_slice %215 {offsets = [0, 96], sizes = [2, 32], strides = [1, 1]} : vector<2x128xf32> to vector<2x32xf32>
    %220 = arith.mulf %217, %199 : vector<2x32xf32>
    %221 = arith.mulf %216, %218 : vector<2x32xf32>
    %222 = arith.addf %220, %221 : vector<2x32xf32>
    %223 = math.tanh %222 : vector<2x32xf32>
    %224 = arith.mulf %219, %223 : vector<2x32xf32>
    %cst_45 = arith.constant dense<0.000000e+00> : vector<2x128xf32>
    %225 = tpu.matmul %224, %4, %cst_45 {dimension_numbers = #tpu.dot_dimension_numbers<[1], [0], [0], [1], [0, 0, 1, 1], [], []>} : vector<2x32xf32>, vector<32x128xf32>, vector<2x128xf32> -> vector<2x128xf32>
    %226 = vector.broadcast %6 : vector<1x128xf32> to vector<2x128xf32>
    %227 = arith.addf %225, %226 : vector<2x128xf32>
    %cst_46 = arith.constant 0.000000e+00 : f32
    %228 = vector.broadcast %cst_46 : f32 to vector<2x32xf32>
    %cst_47 = arith.constant 0.000000e+00 : f32
    %229 = vector.broadcast %cst_47 : f32 to vector<2x32xf32>
    %cst_48 = arith.constant dense<0.000000e+00> : vector<2x128xf32>
    %230 = tpu.matmul %228, %5, %cst_48 {dimension_numbers = #tpu.dot_dimension_numbers<[1], [0], [0], [1], [0, 0, 1, 1], [], []>} : vector<2x32xf32>, vector<32x128xf32>, vector<2x128xf32> -> vector<2x128xf32>
    %231 = arith.addf %66, %230 : vector<2x128xf32>
    %cst_49 = arith.constant 5.000000e-01 : f32
    %232 = vector.broadcast %cst_49 : f32 to vector<2x128xf32>
    %233 = arith.mulf %232, %231 : vector<2x128xf32>
    %234 = arith.select %12, %231, %233 : vector<2x128xi1>, vector<2x128xf32>
    %235 = math.tanh %234 : vector<2x128xf32>
    %cst_50 = arith.constant 1.000000e+00 : f32
    %236 = vector.broadcast %cst_50 : f32 to vector<2x128xf32>
    %237 = arith.addf %235, %236 : vector<2x128xf32>
    %cst_51 = arith.constant 5.000000e-01 : f32
    %238 = vector.broadcast %cst_51 : f32 to vector<2x128xf32>
    %239 = arith.mulf %238, %237 : vector<2x128xf32>
    %240 = arith.select %12, %235, %239 : vector<2x128xi1>, vector<2x128xf32>
    %241 = vector.extract_strided_slice %240 {offsets = [0, 0], sizes = [2, 32], strides = [1, 1]} : vector<2x128xf32> to vector<2x32xf32>
    %242 = vector.extract_strided_slice %240 {offsets = [0, 32], sizes = [2, 32], strides = [1, 1]} : vector<2x128xf32> to vector<2x32xf32>
    %243 = vector.extract_strided_slice %240 {offsets = [0, 64], sizes = [2, 32], strides = [1, 1]} : vector<2x128xf32> to vector<2x32xf32>
    %244 = vector.extract_strided_slice %240 {offsets = [0, 96], sizes = [2, 32], strides = [1, 1]} : vector<2x128xf32> to vector<2x32xf32>
    %245 = arith.mulf %242, %229 : vector<2x32xf32>
    %246 = arith.mulf %241, %243 : vector<2x32xf32>
    %247 = arith.addf %245, %246 : vector<2x32xf32>
    %248 = math.tanh %247 : vector<2x32xf32>
    %249 = arith.mulf %244, %248 : vector<2x32xf32>
    %cst_52 = arith.constant dense<0.000000e+00> : vector<2x128xf32>
    %250 = tpu.matmul %249, %5, %cst_52 {dimension_numbers = #tpu.dot_dimension_numbers<[1], [0], [0], [1], [0, 0, 1, 1], [], []>} : vector<2x32xf32>, vector<32x128xf32>, vector<2x128xf32> -> vector<2x128xf32>
    %251 = arith.addf %89, %250 : vector<2x128xf32>
    %cst_53 = arith.constant 5.000000e-01 : f32
    %252 = vector.broadcast %cst_53 : f32 to vector<2x128xf32>
    %253 = arith.mulf %252, %251 : vector<2x128xf32>
    %254 = arith.select %12, %251, %253 : vector<2x128xi1>, vector<2x128xf32>
    %255 = math.tanh %254 : vector<2x128xf32>
    %cst_54 = arith.constant 1.000000e+00 : f32
    %256 = vector.broadcast %cst_54 : f32 to vector<2x128xf32>
    %257 = arith.addf %255, %256 : vector<2x128xf32>
    %cst_55 = arith.constant 5.000000e-01 : f32
    %258 = vector.broadcast %cst_55 : f32 to vector<2x128xf32>
    %259 = arith.mulf %258, %257 : vector<2x128xf32>
    %260 = arith.select %12, %255, %259 : vector<2x128xi1>, vector<2x128xf32>
    %261 = vector.extract_strided_slice %260 {offsets = [0, 0], sizes = [2, 32], strides = [1, 1]} : vector<2x128xf32> to vector<2x32xf32>
    %262 = vector.extract_strided_slice %260 {offsets = [0, 32], sizes = [2, 32], strides = [1, 1]} : vector<2x128xf32> to vector<2x32xf32>
    %263 = vector.extract_strided_slice %260 {offsets = [0, 64], sizes = [2, 32], strides = [1, 1]} : vector<2x128xf32> to vector<2x32xf32>
    %264 = vector.extract_strided_slice %260 {offsets = [0, 96], sizes = [2, 32], strides = [1, 1]} : vector<2x128xf32> to vector<2x32xf32>
    %265 = arith.mulf %262, %247 : vector<2x32xf32>
    %266 = arith.mulf %261, %263 : vector<2x32xf32>
    %267 = arith.addf %265, %266 : vector<2x32xf32>
    %268 = math.tanh %267 : vector<2x32xf32>
    %269 = arith.mulf %264, %268 : vector<2x32xf32>
    %cst_56 = arith.constant dense<0.000000e+00> : vector<2x128xf32>
    %270 = tpu.matmul %269, %5, %cst_56 {dimension_numbers = #tpu.dot_dimension_numbers<[1], [0], [0], [1], [0, 0, 1, 1], [], []>} : vector<2x32xf32>, vector<32x128xf32>, vector<2x128xf32> -> vector<2x128xf32>
    %271 = arith.addf %112, %270 : vector<2x128xf32>
    %cst_57 = arith.constant 5.000000e-01 : f32
    %272 = vector.broadcast %cst_57 : f32 to vector<2x128xf32>
    %273 = arith.mulf %272, %271 : vector<2x128xf32>
    %274 = arith.select %12, %271, %273 : vector<2x128xi1>, vector<2x128xf32>
    %275 = math.tanh %274 : vector<2x128xf32>
    %cst_58 = arith.constant 1.000000e+00 : f32
    %276 = vector.broadcast %cst_58 : f32 to vector<2x128xf32>
    %277 = arith.addf %275, %276 : vector<2x128xf32>
    %cst_59 = arith.constant 5.000000e-01 : f32
    %278 = vector.broadcast %cst_59 : f32 to vector<2x128xf32>
    %279 = arith.mulf %278, %277 : vector<2x128xf32>
    %280 = arith.select %12, %275, %279 : vector<2x128xi1>, vector<2x128xf32>
    %281 = vector.extract_strided_slice %280 {offsets = [0, 0], sizes = [2, 32], strides = [1, 1]} : vector<2x128xf32> to vector<2x32xf32>
    %282 = vector.extract_strided_slice %280 {offsets = [0, 32], sizes = [2, 32], strides = [1, 1]} : vector<2x128xf32> to vector<2x32xf32>
    %283 = vector.extract_strided_slice %280 {offsets = [0, 64], sizes = [2, 32], strides = [1, 1]} : vector<2x128xf32> to vector<2x32xf32>
    %284 = vector.extract_strided_slice %280 {offsets = [0, 96], sizes = [2, 32], strides = [1, 1]} : vector<2x128xf32> to vector<2x32xf32>
    %285 = arith.mulf %282, %267 : vector<2x32xf32>
    %286 = arith.mulf %281, %283 : vector<2x32xf32>
    %287 = arith.addf %285, %286 : vector<2x32xf32>
    %288 = math.tanh %287 : vector<2x32xf32>
    %289 = arith.mulf %284, %288 : vector<2x32xf32>
    %cst_60 = arith.constant dense<0.000000e+00> : vector<2x128xf32>
    %290 = tpu.matmul %289, %5, %cst_60 {dimension_numbers = #tpu.dot_dimension_numbers<[1], [0], [0], [1], [0, 0, 1, 1], [], []>} : vector<2x32xf32>, vector<32x128xf32>, vector<2x128xf32> -> vector<2x128xf32>
    %291 = arith.addf %135, %290 : vector<2x128xf32>
    %cst_61 = arith.constant 5.000000e-01 : f32
    %292 = vector.broadcast %cst_61 : f32 to vector<2x128xf32>
    %293 = arith.mulf %292, %291 : vector<2x128xf32>
    %294 = arith.select %12, %291, %293 : vector<2x128xi1>, vector<2x128xf32>
    %295 = math.tanh %294 : vector<2x128xf32>
    %cst_62 = arith.constant 1.000000e+00 : f32
    %296 = vector.broadcast %cst_62 : f32 to vector<2x128xf32>
    %297 = arith.addf %295, %296 : vector<2x128xf32>
    %cst_63 = arith.constant 5.000000e-01 : f32
    %298 = vector.broadcast %cst_63 : f32 to vector<2x128xf32>
    %299 = arith.mulf %298, %297 : vector<2x128xf32>
    %300 = arith.select %12, %295, %299 : vector<2x128xi1>, vector<2x128xf32>
    %301 = vector.extract_strided_slice %300 {offsets = [0, 0], sizes = [2, 32], strides = [1, 1]} : vector<2x128xf32> to vector<2x32xf32>
    %302 = vector.extract_strided_slice %300 {offsets = [0, 32], sizes = [2, 32], strides = [1, 1]} : vector<2x128xf32> to vector<2x32xf32>
    %303 = vector.extract_strided_slice %300 {offsets = [0, 64], sizes = [2, 32], strides = [1, 1]} : vector<2x128xf32> to vector<2x32xf32>
    %304 = vector.extract_strided_slice %300 {offsets = [0, 96], sizes = [2, 32], strides = [1, 1]} : vector<2x128xf32> to vector<2x32xf32>
    %305 = arith.mulf %302, %287 : vector<2x32xf32>
    %306 = arith.mulf %301, %303 : vector<2x32xf32>
    %307 = arith.addf %305, %306 : vector<2x32xf32>
    %308 = math.tanh %307 : vector<2x32xf32>
    %309 = arith.mulf %304, %308 : vector<2x32xf32>
    %cst_64 = arith.constant dense<0.000000e+00> : vector<2x128xf32>
    %310 = tpu.matmul %309, %5, %cst_64 {dimension_numbers = #tpu.dot_dimension_numbers<[1], [0], [0], [1], [0, 0, 1, 1], [], []>} : vector<2x32xf32>, vector<32x128xf32>, vector<2x128xf32> -> vector<2x128xf32>
    %311 = arith.addf %158, %310 : vector<2x128xf32>
    %cst_65 = arith.constant 5.000000e-01 : f32
    %312 = vector.broadcast %cst_65 : f32 to vector<2x128xf32>
    %313 = arith.mulf %312, %311 : vector<2x128xf32>
    %314 = arith.select %12, %311, %313 : vector<2x128xi1>, vector<2x128xf32>
    %315 = math.tanh %314 : vector<2x128xf32>
    %cst_66 = arith.constant 1.000000e+00 : f32
    %316 = vector.broadcast %cst_66 : f32 to vector<2x128xf32>
    %317 = arith.addf %315, %316 : vector<2x128xf32>
    %cst_67 = arith.constant 5.000000e-01 : f32
    %318 = vector.broadcast %cst_67 : f32 to vector<2x128xf32>
    %319 = arith.mulf %318, %317 : vector<2x128xf32>
    %320 = arith.select %12, %315, %319 : vector<2x128xi1>, vector<2x128xf32>
    %321 = vector.extract_strided_slice %320 {offsets = [0, 0], sizes = [2, 32], strides = [1, 1]} : vector<2x128xf32> to vector<2x32xf32>
    %322 = vector.extract_strided_slice %320 {offsets = [0, 32], sizes = [2, 32], strides = [1, 1]} : vector<2x128xf32> to vector<2x32xf32>
    %323 = vector.extract_strided_slice %320 {offsets = [0, 64], sizes = [2, 32], strides = [1, 1]} : vector<2x128xf32> to vector<2x32xf32>
    %324 = vector.extract_strided_slice %320 {offsets = [0, 96], sizes = [2, 32], strides = [1, 1]} : vector<2x128xf32> to vector<2x32xf32>
    %325 = arith.mulf %322, %307 : vector<2x32xf32>
    %326 = arith.mulf %321, %323 : vector<2x32xf32>
    %327 = arith.addf %325, %326 : vector<2x32xf32>
    %328 = math.tanh %327 : vector<2x32xf32>
    %329 = arith.mulf %324, %328 : vector<2x32xf32>
    %cst_68 = arith.constant dense<0.000000e+00> : vector<2x128xf32>
    %330 = tpu.matmul %329, %5, %cst_68 {dimension_numbers = #tpu.dot_dimension_numbers<[1], [0], [0], [1], [0, 0, 1, 1], [], []>} : vector<2x32xf32>, vector<32x128xf32>, vector<2x128xf32> -> vector<2x128xf32>
    %331 = arith.addf %181, %330 : vector<2x128xf32>
    %cst_69 = arith.constant 5.000000e-01 : f32
    %332 = vector.broadcast %cst_69 : f32 to vector<2x128xf32>
    %333 = arith.mulf %332, %331 : vector<2x128xf32>
    %334 = arith.select %12, %331, %333 : vector<2x128xi1>, vector<2x128xf32>
    %335 = math.tanh %334 : vector<2x128xf32>
    %cst_70 = arith.constant 1.000000e+00 : f32
    %336 = vector.broadcast %cst_70 : f32 to vector<2x128xf32>
    %337 = arith.addf %335, %336 : vector<2x128xf32>
    %cst_71 = arith.constant 5.000000e-01 : f32
    %338 = vector.broadcast %cst_71 : f32 to vector<2x128xf32>
    %339 = arith.mulf %338, %337 : vector<2x128xf32>
    %340 = arith.select %12, %335, %339 : vector<2x128xi1>, vector<2x128xf32>
    %341 = vector.extract_strided_slice %340 {offsets = [0, 0], sizes = [2, 32], strides = [1, 1]} : vector<2x128xf32> to vector<2x32xf32>
    %342 = vector.extract_strided_slice %340 {offsets = [0, 32], sizes = [2, 32], strides = [1, 1]} : vector<2x128xf32> to vector<2x32xf32>
    %343 = vector.extract_strided_slice %340 {offsets = [0, 64], sizes = [2, 32], strides = [1, 1]} : vector<2x128xf32> to vector<2x32xf32>
    %344 = vector.extract_strided_slice %340 {offsets = [0, 96], sizes = [2, 32], strides = [1, 1]} : vector<2x128xf32> to vector<2x32xf32>
    %345 = arith.mulf %342, %327 : vector<2x32xf32>
    %346 = arith.mulf %341, %343 : vector<2x32xf32>
    %347 = arith.addf %345, %346 : vector<2x32xf32>
    %348 = math.tanh %347 : vector<2x32xf32>
    %349 = arith.mulf %344, %348 : vector<2x32xf32>
    %cst_72 = arith.constant dense<0.000000e+00> : vector<2x128xf32>
    %350 = tpu.matmul %349, %5, %cst_72 {dimension_numbers = #tpu.dot_dimension_numbers<[1], [0], [0], [1], [0, 0, 1, 1], [], []>} : vector<2x32xf32>, vector<32x128xf32>, vector<2x128xf32> -> vector<2x128xf32>
    %351 = arith.addf %204, %350 : vector<2x128xf32>
    %cst_73 = arith.constant 5.000000e-01 : f32
    %352 = vector.broadcast %cst_73 : f32 to vector<2x128xf32>
    %353 = arith.mulf %352, %351 : vector<2x128xf32>
    %354 = arith.select %12, %351, %353 : vector<2x128xi1>, vector<2x128xf32>
    %355 = math.tanh %354 : vector<2x128xf32>
    %cst_74 = arith.constant 1.000000e+00 : f32
    %356 = vector.broadcast %cst_74 : f32 to vector<2x128xf32>
    %357 = arith.addf %355, %356 : vector<2x128xf32>
    %cst_75 = arith.constant 5.000000e-01 : f32
    %358 = vector.broadcast %cst_75 : f32 to vector<2x128xf32>
    %359 = arith.mulf %358, %357 : vector<2x128xf32>
    %360 = arith.select %12, %355, %359 : vector<2x128xi1>, vector<2x128xf32>
    %361 = vector.extract_strided_slice %360 {offsets = [0, 0], sizes = [2, 32], strides = [1, 1]} : vector<2x128xf32> to vector<2x32xf32>
    %362 = vector.extract_strided_slice %360 {offsets = [0, 32], sizes = [2, 32], strides = [1, 1]} : vector<2x128xf32> to vector<2x32xf32>
    %363 = vector.extract_strided_slice %360 {offsets = [0, 64], sizes = [2, 32], strides = [1, 1]} : vector<2x128xf32> to vector<2x32xf32>
    %364 = vector.extract_strided_slice %360 {offsets = [0, 96], sizes = [2, 32], strides = [1, 1]} : vector<2x128xf32> to vector<2x32xf32>
    %365 = arith.mulf %362, %347 : vector<2x32xf32>
    %366 = arith.mulf %361, %363 : vector<2x32xf32>
    %367 = arith.addf %365, %366 : vector<2x32xf32>
    %368 = math.tanh %367 : vector<2x32xf32>
    %369 = arith.mulf %364, %368 : vector<2x32xf32>
    %cst_76 = arith.constant dense<0.000000e+00> : vector<2x128xf32>
    %370 = tpu.matmul %369, %5, %cst_76 {dimension_numbers = #tpu.dot_dimension_numbers<[1], [0], [0], [1], [0, 0, 1, 1], [], []>} : vector<2x32xf32>, vector<32x128xf32>, vector<2x128xf32> -> vector<2x128xf32>
    %371 = arith.addf %227, %370 : vector<2x128xf32>
    %cst_77 = arith.constant 5.000000e-01 : f32
    %372 = vector.broadcast %cst_77 : f32 to vector<2x128xf32>
    %373 = arith.mulf %372, %371 : vector<2x128xf32>
    %374 = arith.select %12, %371, %373 : vector<2x128xi1>, vector<2x128xf32>
    %375 = math.tanh %374 : vector<2x128xf32>
    %cst_78 = arith.constant 1.000000e+00 : f32
    %376 = vector.broadcast %cst_78 : f32 to vector<2x128xf32>
    %377 = arith.addf %375, %376 : vector<2x128xf32>
    %cst_79 = arith.constant 5.000000e-01 : f32
    %378 = vector.broadcast %cst_79 : f32 to vector<2x128xf32>
    %379 = arith.mulf %378, %377 : vector<2x128xf32>
    %380 = arith.select %12, %375, %379 : vector<2x128xi1>, vector<2x128xf32>
    %381 = vector.extract_strided_slice %380 {offsets = [0, 0], sizes = [2, 32], strides = [1, 1]} : vector<2x128xf32> to vector<2x32xf32>
    %382 = vector.extract_strided_slice %380 {offsets = [0, 32], sizes = [2, 32], strides = [1, 1]} : vector<2x128xf32> to vector<2x32xf32>
    %383 = vector.extract_strided_slice %380 {offsets = [0, 64], sizes = [2, 32], strides = [1, 1]} : vector<2x128xf32> to vector<2x32xf32>
    %384 = vector.extract_strided_slice %380 {offsets = [0, 96], sizes = [2, 32], strides = [1, 1]} : vector<2x128xf32> to vector<2x32xf32>
    %385 = arith.mulf %382, %367 : vector<2x32xf32>
    %386 = arith.mulf %381, %383 : vector<2x32xf32>
    %387 = arith.addf %385, %386 : vector<2x32xf32>
    %388 = math.tanh %387 : vector<2x32xf32>
    %389 = arith.mulf %384, %388 : vector<2x32xf32>
    %c0_80 = arith.constant 0 : index
    %c0_81 = arith.constant 0 : index
    %390 = vector.load %arg2[%c0_80, %c0_81] : memref<33x4xf32, #tpu.memory_space<vmem>>, vector<33x4xf32>
    %391 = vector.extract_strided_slice %390 {offsets = [0, 0], sizes = [32, 4], strides = [1, 1]} : vector<33x4xf32> to vector<32x4xf32>
    %cst_82 = arith.constant dense<0.000000e+00> : vector<2x4xf32>
    %392 = tpu.matmul %389, %391, %cst_82 {dimension_numbers = #tpu.dot_dimension_numbers<[1], [0], [0], [1], [0, 0, 1, 1], [], []>} : vector<2x32xf32>, vector<32x4xf32>, vector<2x4xf32> -> vector<2x4xf32>
    %393 = vector.extract_strided_slice %390 {offsets = [32, 0], sizes = [1, 4], strides = [1, 1]} : vector<33x4xf32> to vector<1x4xf32>
    %394 = vector.broadcast %393 : vector<1x4xf32> to vector<2x4xf32>
    %395 = arith.addf %392, %394 : vector<2x4xf32>
    %c0_83 = arith.constant 0 : index
    %c0_84 = arith.constant 0 : index
    %396 = vector.load %arg3[%c0_83, %c0_84] : memref<2x4xf32, #tpu.memory_space<vmem>>, vector<2x4xf32>
    tpu.vector_store %arg3[%c0_83, %c0_84], %395 {strides = array<i32>} : memref<2x4xf32, #tpu.memory_space<vmem>>, vector<2x4xf32>,
    return
  }
}

</mosaic_0001>

<llo_original>
// kernel: lstm_model_forward.1
$region0: #{lstm_model_forward.1}
  #allocation0 [shape = 'u32[]', space=smem, size = 0x4, offset = 0x4, fixed_abs, tag = 'smem constant byte address 0x4 - core index']
  #allocation1 [shape = 'u32[144,128]{1,0:T(1,128)}', space=vmem, size = 0x12000, scoped, tag = 'internal scratch']
  %s0 = inlined_call_operand.vmem [shape: f32[2,8,16], index: 0, kind: input, shape index: {}]
  %s1 = inlined_call_operand.hbm [shape: f32[128,128], index: 1, kind: input, shape index: {}]
  %s2 = inlined_call_operand.vmem [shape: f32[33,4], index: 2, kind: input, shape index: {}]
  %s3 = inlined_call_operand.hbm [shape: f32[2,4], index: 3, kind: output, shape index: {}]
  %s4 = sld [smem:[#allocation0]]
  $region26: #{lstm_model_forward.1} parent=0
    _
  %s6 = ssub.s32 1, %s4
  %s7 = scalar_select 0, %s6, %s4
  $region1: #{lstm_model_forward.1} parent=0
    #allocation2 [shape = 'u8[65536]{0}', space=vmem, size = 0x10000, scoped, tag = 'input window, operand 1, single buffered']
    #allocation3 [shape = 's32[1]{0}', space=sflag, size = 0x4, scoped, tag = 'scoped memory for lstm_model_forward.1']
    #allocation4 [shape = 's32[1]{0}', space=sflag, size = 0x4, scoped, tag = 'scoped memory for lstm_model_forward.1']
    #allocation5 [shape = 'u8[1024]{0}', space=vmem, size = 0x400, scoped, tag = 'output window, operand 0, single buffered']
    %8 = vsyncpa [#allocation3], 0
    %9 = vsyncpa [#allocation4], 0
    // Predicated region
    $region2: #{lstm_model_forward.1} parent=1 // pred_check
      _
    $region3: #{lstm_model_forward.1} parent=1 // pred_check_branch
      %11 = sbr.rel (0) target = $region5
    $region4: #{lstm_model_forward.1} parent=1 // pred_region
      _
    $region5: #{lstm_model_forward.1} parent=1 // pred_fallthru
      _
    // Predicated region
    $region6: #{lstm_model_forward.1} parent=1 // pred_check
      _
    $region7: #{lstm_model_forward.1} parent=1 // pred_check_branch
      %13 = sbr.rel (0) target = $region9
    $region8: #{lstm_model_forward.1} parent=1 // pred_region
      %s15 = ssub.s32 2048, 2048
      %16 = vsyncadd [#allocation3], %s15
      %s17 = sshll.u32 [#allocation2], 4
      %s18 = int_to_ptr.vmem [resolvable:$true] %s17
      %23 = dma.hbm_to_vmem [thread:$0]  %s1, 2048, %s18, [#allocation3], 128, 128, 8
    $region9: #{lstm_model_forward.1} parent=1 // pred_fallthru
      _
    // Predicated region
    $region10: #{lstm_model_forward.1} parent=1 // pred_check
      _
    $region11: #{lstm_model_forward.1} parent=1 // pred_check_branch
      %25 = sbr.rel (0) target = $region13
    $region12: #{lstm_model_forward.1} parent=1 // pred_region
      _
    $region13: #{lstm_model_forward.1} parent=1 // pred_fallthru
      _
    // Predicated region
    $region14: #{lstm_model_forward.1} parent=1 // pred_check
      _
    $region15: #{lstm_model_forward.1} parent=1 // pred_check_branch
      %27 = sbr.rel (0) target = $region17
    $region16: #{lstm_model_forward.1} parent=1 // pred_region
      %28 = dma.done [#allocation3], 2048
    $region17: #{lstm_model_forward.1} parent=1 // pred_fallthru
      _
    %v29 = vld [vmem:[#allocation2] sm:$0xff]
    %v30 = vld [vmem:[#allocation2 + $0x8] sm:$0xff]
    %v31 = vld [vmem:[#allocation2 + $0x10] sm:$0xff]
    %v32 = vld [vmem:[#allocation2 + $0x18] sm:$0xff]
    %v33 = vld [vmem:[#allocation2 + $0x20] sm:$0xff]
    %v34 = vld [vmem:[#allocation2 + $0x28] sm:$0xff]
    %v35 = vld [vmem:[#allocation2 + $0x30] sm:$0xff]
    %v36 = vld [vmem:[#allocation2 + $0x38] sm:$0xff]
    %v37 = vld [vmem:[#allocation2 + $0x40] sm:$0xff]
    %v38 = vld [vmem:[#allocation2 + $0x48] sm:$0xff]
    %v39 = vld [vmem:[#allocation2 + $0x50] sm:$0xff]
    %v40 = vld [vmem:[#allocation2 + $0x58] sm:$0xff]
    %v41 = vld [vmem:[#allocation2 + $0x60] sm:$0xff]
    %v42 = vld [vmem:[#allocation2 + $0x68] sm:$0xff]
    %v43 = vld [vmem:[#allocation2 + $0x70] sm:$0xff]
    %v44 = vld [vmem:[#allocation2 + $0x78] sm:$0xff]
    %v45 = vlaneseq
    %v46 = vand.u32 %v45, 127
    %vm47 = vcmp.ge.s32.totalorder %v46, 64
    %vm48 = vcmp.lt.s32.totalorder %v46, 96
    %vm49 = vmand %vm47, %vm48
    %v50 = vld [vmem:[%s0] sm:$0xff]
    %v51 = vld [vmem:[%s0 + $0x8] sm:$0xff]
    %v54 = vrot.slane %v51, 7
    %vm55 = vcmask 1041409
    %v56 = vsel %vm55, %v54, %v50
    %v58 = vrot.slane %v50, 7
    %v59 = vrot.slane %v51, 6
    %vm60 = vcmask 1043459
    %v61 = vsel %vm60, %v59, %v58
    %v63 = vrot.slane %v50, 6
    %v64 = vrot.slane %v51, 5
    %vm65 = vcmask 1045509
    %v66 = vsel %vm65, %v64, %v63
    %v68 = vrot.slane %v50, 5
    %v69 = vrot.slane %v51, 4
    %vm70 = vcmask 1047559
    %v71 = vsel %vm70, %v69, %v68
    %v73 = vrot.slane %v50, 4
    %v74 = vrot.slane %v51, 3
    %v75 = vsel %vm55, %v74, %v73
    %v77 = vrot.slane %v50, 3
    %v78 = vrot.slane %v51, 2
    %v79 = vsel %vm60, %v78, %v77
    %v81 = vrot.slane %v50, 2
    %v82 = vrot.slane %v51, 1
    %v83 = vsel %vm65, %v82, %v81
    %v85 = vrot.slane %v50, 1
    %v86 = vsel %vm70, %v51, %v85
    %vm88 = vcmask 1041408
    %v89 = vsel %vm88, %v56, %v61
    %vm90 = vcmask 1043456
    %v91 = vsel %vm90, %v89, %v66
    %vm92 = vcmask 1045504
    %v93 = vsel %vm92, %v91, %v71
    %v94 = vsel %vm88, %v75, %v79
    %v95 = vsel %vm90, %v94, %v83
    %v96 = vsel %vm92, %v95, %v86
    %v97 = vlaneseq
    %v98 = vshrl.u32 %v97, 7
    %v99 = vsub.s32 0, %v98
    %v100 = vrot.slane %v35, %v99
    %vm101 = vcmask 130048
    %v103 = vsel %vm101, %v93, 0
    %v106 = vsel %vm101, %v96, 0
    %108 = vmatprep.subr.mxu0 0.0
    %109 = vmatpush1.msra.mxu0 %v29
    %110 = vmatprep.subr.mxu0 0.0
    %111 = vmatpush1.msra.mxu0 %v30
    %112 = vmatprep.subr.mxu0 0.0
    %113 = vmatpush1.msra.mxu0 0.0
    %114 = vmatprep.subr.mxu0 0.0
    %115 = vmatpush1.msra.mxu0 0.0
    %116 = vmatprep.subr.mxu0 0.0
    %117 = vmatpush1.msra.mxu0 0.0
    %118 = vmatprep.subr.mxu0 0.0
    %119 = vmatpush1.msra.mxu0 0.0
    %120 = vmatprep.subr.mxu0 0.0
    %121 = vmatpush1.msra.mxu0 0.0
    %122 = vmatprep.subr.mxu0 0.0
    %123 = vmatpush1.msra.mxu0 0.0
    %124 = vmatprep.subr.mxu0 0.0
    %125 = vmatpush1.msra.mxu0 0.0
    %126 = vmatprep.subr.mxu0 0.0
    %127 = vmatpush1.msra.mxu0 0.0
    %128 = vmatprep.subr.mxu0 0.0
    %129 = vmatpush1.msra.mxu0 0.0
    %130 = vmatprep.subr.mxu0 0.0
    %131 = vmatpush1.msra.mxu0 0.0
    %132 = vmatprep.subr.mxu0 0.0
    %133 = vmatpush1.msra.mxu0 0.0
    %134 = vmatprep.subr.mxu0 0.0
    %135 = vmatpush1.msra.mxu0 0.0
    %136 = vmatprep.subr.mxu0 0.0
    %137 = vmatpush1.msra.mxu0 0.0
    %138 = vmatprep.subr.mxu0 0.0
    %139 = vmatpush1.msra.mxu0 0.0
    %140 = vmatprep.subr.mxu0 0.0
    %141 = vmatpush1.msra.mxu0 0.0
    %142 = vmatprep.subr.mxu0 0.0
    %143 = vmatpush1.msra.mxu0 0.0
    %144 = vmatprep.subr.mxu0 0.0
    %145 = vmatpush1.msra.mxu0 0.0
    %146 = vmatprep.subr.mxu0 0.0
    %147 = vmatpush1.msra.mxu0 0.0
    %148 = vmatprep.subr.mxu0 0.0
    %149 = vmatpush1.msra.mxu0 0.0
    %150 = vmatprep.subr.mxu0 0.0
    %151 = vmatpush1.msra.mxu0 0.0
    %152 = vmatprep.subr.mxu0 0.0
    %153 = vmatpush1.msra.mxu0 0.0
    %154 = vmatprep.subr.mxu0 0.0
    %155 = vmatpush1.msra.mxu0 0.0
    %156 = vmatprep.subr.mxu0 0.0
    %157 = vmatpush1.msra.mxu0 0.0
    %158 = vmatprep.subr.mxu0 0.0
    %159 = vmatpush1.msra.mxu0 0.0
    %160 = vmatprep.subr.mxu0 0.0
    %161 = vmatpush1.msra.mxu0 0.0
    %162 = vmatprep.subr.mxu0 0.0
    %163 = vmatpush1.msra.mxu0 0.0
    %164 = vmatprep.subr.mxu0 0.0
    %165 = vmatpush1.msra.mxu0 0.0
    %166 = vmatprep.subr.mxu0 0.0
    %167 = vmatpush1.msra.mxu0 0.0
    %168 = vmatprep.subr.mxu0 0.0
    %169 = vmatpush1.msra.mxu0 0.0
    %170 = vmatprep.subr.mxu0 0.0
    %171 = vmatpush1.msra.mxu0 0.0
    %172 = vmatprep.mubr.f32.mxu0 0.0
    %173 = vmatmul.mubr.f32.gmra.mrb[0].mxu0 %v103
    %v174 = vpop.f32.mrb[0].mxu0
    %v175 = vadd.f32 %v100, %v174
    %v176 = vpop.f32.mrb[0].mxu0
    %177 = vmatprep.mubr.f32.mxu0 0.0
    %178 = vmatmul.mubr.f32.gmra.mrb[0].mxu0 %v106
    %v179 = vpop.f32.mrb[0].mxu0
    %v180 = vadd.f32 %v100, %v179
    %v181 = vpop.f32.mrb[0].mxu0
    %182 = vdwg.mxu0
    %vm183 = vcmask 261120
    %v185 = vsel %vm183, 0.0, 0
    %187 = vmatprep.subr.mxu0 0.0
    %188 = vmatpush1.msra.mxu0 %v31
    %189 = vmatprep.subr.mxu0 0.0
    %190 = vmatpush1.msra.mxu0 %v32
    %191 = vmatprep.subr.mxu0 0.0
    %192 = vmatpush1.msra.mxu0 %v33
    %193 = vmatprep.subr.mxu0 0.0
    %194 = vmatpush1.msra.mxu0 %v34
    %195 = vmatprep.subr.mxu0 0.0
    %196 = vmatpush1.msra.mxu0 0.0
    %197 = vmatprep.subr.mxu0 0.0
    %198 = vmatpush1.msra.mxu0 0.0
    %199 = vmatprep.subr.mxu0 0.0
    %200 = vmatpush1.msra.mxu0 0.0
    %201 = vmatprep.subr.mxu0 0.0
    %202 = vmatpush1.msra.mxu0 0.0
    %203 = vmatprep.subr.mxu0 0.0
    %204 = vmatpush1.msra.mxu0 0.0
    %205 = vmatprep.subr.mxu0 0.0
    %206 = vmatpush1.msra.mxu0 0.0
    %207 = vmatprep.subr.mxu0 0.0
    %208 = vmatpush1.msra.mxu0 0.0
    %209 = vmatprep.subr.mxu0 0.0
    %210 = vmatpush1.msra.mxu0 0.0
    %211 = vmatprep.subr.mxu0 0.0
    %212 = vmatpush1.msra.mxu0 0.0
    %213 = vmatprep.subr.mxu0 0.0
    %214 = vmatpush1.msra.mxu0 0.0
    %215 = vmatprep.subr.mxu0 0.0
    %216 = vmatpush1.msra.mxu0 0.0
    %217 = vmatprep.subr.mxu0 0.0
    %218 = vmatpush1.msra.mxu0 0.0
    %219 = vmatprep.subr.mxu0 0.0
    %220 = vmatpush1.msra.mxu0 0.0
    %221 = vmatprep.subr.mxu0 0.0
    %222 = vmatpush1.msra.mxu0 0.0
    %223 = vmatprep.subr.mxu0 0.0
    %224 = vmatpush1.msra.mxu0 0.0
    %225 = vmatprep.subr.mxu0 0.0
    %226 = vmatpush1.msra.mxu0 0.0
    %227 = vmatprep.subr.mxu0 0.0
    %228 = vmatpush1.msra.mxu0 0.0
    %229 = vmatprep.subr.mxu0 0.0
    %230 = vmatpush1.msra.mxu0 0.0
    %231 = vmatprep.subr.mxu0 0.0
    %232 = vmatpush1.msra.mxu0 0.0
    %233 = vmatprep.subr.mxu0 0.0
    %234 = vmatpush1.msra.mxu0 0.0
    %235 = vmatprep.subr.mxu0 0.0
    %236 = vmatpush1.msra.mxu0 0.0
    %237 = vmatprep.subr.mxu0 0.0
    %238 = vmatpush1.msra.mxu0 0.0
    %239 = vmatprep.subr.mxu0 0.0
    %240 = vmatpush1.msra.mxu0 0.0
    %241 = vmatprep.subr.mxu0 0.0
    %242 = vmatpush1.msra.mxu0 0.0
    %243 = vmatprep.subr.mxu0 0.0
    %244 = vmatpush1.msra.mxu0 0.0
    %245 = vmatprep.subr.mxu0 0.0
    %246 = vmatpush1.msra.mxu0 0.0
    %247 = vmatprep.subr.mxu0 0.0
    %248 = vmatpush1.msra.mxu0 0.0
    %249 = vmatprep.subr.mxu0 0.0
    %250 = vmatpush1.msra.mxu0 0.0
    %251 = vmatprep.mubr.f32.mxu0 0.0
    %252 = vmatmul.mubr.f32.gmra.mrb[0].mxu0 %v185
    %v253 = vpop.f32.mrb[0].mxu0
    %v254 = vadd.f32 0.0, %v253
    %v255 = vpop.f32.mrb[0].mxu0
    %256 = vdwg.mxu0
    %v257 = vadd.f32 %v175, %v254
    %v258 = vmul.f32 %v257, 0.5
    %v259 = vsel %vm49, %v257, %v258
    %v260 = vtanh.pop %v259
    %v261 = vadd.f32 %v260, 1.0
    %v262 = vmul.f32 %v261, 0.5
    %v263 = vsel %vm49, %v260, %v262
    %v264 = vmul.f32 %v263, 0.0
    %266 = vrot.lane.b32.xlu0 %v263, 64
    %v267 = vpop.permute.xlu0 %266
    %v269 = vmul.f32 %v263, %v267
    %271 = vrot.lane.b32.xlu0 %v269, 32
    %v272 = vpop.permute.xlu0 %271
    %v274 = vadd.f32 %v264, %v272
    %v275 = vtanh.pop %v274
    %277 = vrot.lane.b32.xlu0 %v275, 64
    %v278 = vpop.permute.xlu0 %277
    %v280 = vmul.f32 %v263, %v278
    %v281 = vlaneseq
    %v282 = vshrl.u32 %v281, 7
    %v283 = vsub.s32 0, %v282
    %v284 = vrot.slane %v44, %v283
    %286 = vrot.lane.b32.xlu0 %v280, 32
    %v287 = vpop.permute.xlu0 %286
    %v288 = vsel %vm183, %v287, 0
    %290 = vmatprep.subr.mxu0 0.0
    %291 = vmatpush1.msra.mxu0 %v36
    %292 = vmatprep.subr.mxu0 0.0
    %293 = vmatpush1.msra.mxu0 %v37
    %294 = vmatprep.subr.mxu0 0.0
    %295 = vmatpush1.msra.mxu0 %v38
    %296 = vmatprep.subr.mxu0 0.0
    %297 = vmatpush1.msra.mxu0 %v39
    %298 = vmatprep.subr.mxu0 0.0
    %299 = vmatpush1.msra.mxu0 0.0
    %300 = vmatprep.subr.mxu0 0.0
    %301 = vmatpush1.msra.mxu0 0.0
    %302 = vmatprep.subr.mxu0 0.0
    %303 = vmatpush1.msra.mxu0 0.0
    %304 = vmatprep.subr.mxu0 0.0
    %305 = vmatpush1.msra.mxu0 0.0
    %306 = vmatprep.subr.mxu0 0.0
    %307 = vmatpush1.msra.mxu0 0.0
    %308 = vmatprep.subr.mxu0 0.0
    %309 = vmatpush1.msra.mxu0 0.0
    %310 = vmatprep.subr.mxu0 0.0
    %311 = vmatpush1.msra.mxu0 0.0
    %312 = vmatprep.subr.mxu0 0.0
    %313 = vmatpush1.msra.mxu0 0.0
    %314 = vmatprep.subr.mxu0 0.0
    %315 = vmatpush1.msra.mxu0 0.0
    %316 = vmatprep.subr.mxu0 0.0
    %317 = vmatpush1.msra.mxu0 0.0
    %318 = vmatprep.subr.mxu0 0.0
    %319 = vmatpush1.msra.mxu0 0.0
    %320 = vmatprep.subr.mxu0 0.0
    %321 = vmatpush1.msra.mxu0 0.0
    %322 = vmatprep.subr.mxu0 0.0
    %323 = vmatpush1.msra.mxu0 0.0
    %324 = vmatprep.subr.mxu0 0.0
    %325 = vmatpush1.msra.mxu0 0.0
    %326 = vmatprep.subr.mxu0 0.0
    %327 = vmatpush1.msra.mxu0 0.0
    %328 = vmatprep.subr.mxu0 0.0
    %329 = vmatpush1.msra.mxu0 0.0
    %330 = vmatprep.subr.mxu0 0.0
    %331 = vmatpush1.msra.mxu0 0.0
    %332 = vmatprep.subr.mxu0 0.0
    %333 = vmatpush1.msra.mxu0 0.0
    %334 = vmatprep.subr.mxu0 0.0
    %335 = vmatpush1.msra.mxu0 0.0
    %336 = vmatprep.subr.mxu0 0.0
    %337 = vmatpush1.msra.mxu0 0.0
    %338 = vmatprep.subr.mxu0 0.0
    %339 = vmatpush1.msra.mxu0 0.0
    %340 = vmatprep.subr.mxu0 0.0
    %341 = vmatpush1.msra.mxu0 0.0
    %342 = vmatprep.subr.mxu0 0.0
    %343 = vmatpush1.msra.mxu0 0.0
    %344 = vmatprep.subr.mxu0 0.0
    %345 = vmatpush1.msra.mxu0 0.0
    %346 = vmatprep.subr.mxu0 0.0
    %347 = vmatpush1.msra.mxu0 0.0
    %348 = vmatprep.subr.mxu0 0.0
    %349 = vmatpush1.msra.mxu0 0.0
    %350 = vmatprep.subr.mxu0 0.0
    %351 = vmatpush1.msra.mxu0 0.0
    %352 = vmatprep.subr.mxu0 0.0
    %353 = vmatpush1.msra.mxu0 0.0
    %354 = vmatprep.mubr.f32.mxu0 0.0
    %355 = vmatmul.mubr.f32.gmra.mrb[0].mxu0 %v288
    %v356 = vpop.f32.mrb[0].mxu0
    %v357 = vadd.f32 %v284, %v356
    %v358 = vpop.f32.mrb[0].mxu0
    %359 = vdwg.mxu0
    %360 = vmatprep.subr.mxu0 0.0
    %361 = vmatpush1.msra.mxu0 %v31
    %362 = vmatprep.subr.mxu0 0.0
    %363 = vmatpush1.msra.mxu0 %v32
    %364 = vmatprep.subr.mxu0 0.0
    %365 = vmatpush1.msra.mxu0 %v33
    %366 = vmatprep.subr.mxu0 0.0
    %367 = vmatpush1.msra.mxu0 %v34
    %368 = vmatprep.subr.mxu0 0.0
    %369 = vmatpush1.msra.mxu0 0.0
    %370 = vmatprep.subr.mxu0 0.0
    %371 = vmatpush1.msra.mxu0 0.0
    %372 = vmatprep.subr.mxu0 0.0
    %373 = vmatpush1.msra.mxu0 0.0
    %374 = vmatprep.subr.mxu0 0.0
    %375 = vmatpush1.msra.mxu0 0.0
    %376 = vmatprep.subr.mxu0 0.0
    %377 = vmatpush1.msra.mxu0 0.0
    %378 = vmatprep.subr.mxu0 0.0
    %379 = vmatpush1.msra.mxu0 0.0
    %380 = vmatprep.subr.mxu0 0.0
    %381 = vmatpush1.msra.mxu0 0.0
    %382 = vmatprep.subr.mxu0 0.0
    %383 = vmatpush1.msra.mxu0 0.0
    %384 = vmatprep.subr.mxu0 0.0
    %385 = vmatpush1.msra.mxu0 0.0
    %386 = vmatprep.subr.mxu0 0.0
    %387 = vmatpush1.msra.mxu0 0.0
    %388 = vmatprep.subr.mxu0 0.0
    %389 = vmatpush1.msra.mxu0 0.0
    %390 = vmatprep.subr.mxu0 0.0
    %391 = vmatpush1.msra.mxu0 0.0
    %392 = vmatprep.subr.mxu0 0.0
    %393 = vmatpush1.msra.mxu0 0.0
    %394 = vmatprep.subr.mxu0 0.0
    %395 = vmatpush1.msra.mxu0 0.0
    %396 = vmatprep.subr.mxu0 0.0
    %397 = vmatpush1.msra.mxu0 0.0
    %398 = vmatprep.subr.mxu0 0.0
    %399 = vmatpush1.msra.mxu0 0.0
    %400 = vmatprep.subr.mxu0 0.0
    %401 = vmatpush1.msra.mxu0 0.0
    %402 = vmatprep.subr.mxu0 0.0
    %403 = vmatpush1.msra.mxu0 0.0
    %404 = vmatprep.subr.mxu0 0.0
    %405 = vmatpush1.msra.mxu0 0.0
    %406 = vmatprep.subr.mxu0 0.0
    %407 = vmatpush1.msra.mxu0 0.0
    %408 = vmatprep.subr.mxu0 0.0
    %409 = vmatpush1.msra.mxu0 0.0
    %410 = vmatprep.subr.mxu0 0.0
    %411 = vmatpush1.msra.mxu0 0.0
    %412 = vmatprep.subr.mxu0 0.0
    %413 = vmatpush1.msra.mxu0 0.0
    %414 = vmatprep.subr.mxu0 0.0
    %415 = vmatpush1.msra.mxu0 0.0
    %416 = vmatprep.subr.mxu0 0.0
    %417 = vmatpush1.msra.mxu0 0.0
    %418 = vmatprep.subr.mxu0 0.0
    %419 = vmatpush1.msra.mxu0 0.0
    %420 = vmatprep.subr.mxu0 0.0
    %421 = vmatpush1.msra.mxu0 0.0
    %422 = vmatprep.subr.mxu0 0.0
    %423 = vmatpush1.msra.mxu0 0.0
    %424 = vmatprep.mubr.f32.mxu0 0.0
    %425 = vmatmul.mubr.f32.gmra.mrb[0].mxu0 %v288
    %v426 = vpop.f32.mrb[0].mxu0
    %v427 = vadd.f32 0.0, %v426
    %v428 = vpop.f32.mrb[0].mxu0
    %429 = vdwg.mxu0
    %v431 = vrot.slane %v427, 6
    %v433 = vadd.f32 %v175, %v431
    %v434 = vmul.f32 %v433, 0.5
    %v435 = vsel %vm49, %v433, %v434
    %v436 = vtanh.pop %v435
    %v437 = vadd.f32 %v436, 1.0
    %v438 = vmul.f32 %v437, 0.5
    %v439 = vsel %vm49, %v436, %v438
    %v441 = vrot.slane %v274, 6
    %v443 = vmul.f32 %v439, %v441
    %445 = vrot.lane.b32.xlu0 %v439, 64
    %v446 = vpop.permute.xlu0 %445
    %v448 = vmul.f32 %v439, %v446
    %450 = vrot.lane.b32.xlu0 %v448, 32
    %v451 = vpop.permute.xlu0 %450
    %v453 = vadd.f32 %v443, %v451
    %v454 = vtanh.pop %v453
    %456 = vrot.lane.b32.xlu0 %v454, 64
    %v457 = vpop.permute.xlu0 %456
    %v459 = vmul.f32 %v439, %v457
    %v461 = vrot.slane %v459, 2
    %462 = vrot.lane.b32.xlu0 %v461, 32
    %v463 = vpop.permute.xlu0 %462
    %v464 = vsel %vm183, %v463, 0
    %466 = vmatprep.subr.mxu0 0.0
    %467 = vmatpush1.msra.mxu0 %v36
    %468 = vmatprep.subr.mxu0 0.0
    %469 = vmatpush1.msra.mxu0 %v37
    %470 = vmatprep.subr.mxu0 0.0
    %471 = vmatpush1.msra.mxu0 %v38
    %472 = vmatprep.subr.mxu0 0.0
    %473 = vmatpush1.msra.mxu0 %v39
    %474 = vmatprep.subr.mxu0 0.0
    %475 = vmatpush1.msra.mxu0 0.0
    %476 = vmatprep.subr.mxu0 0.0
    %477 = vmatpush1.msra.mxu0 0.0
    %478 = vmatprep.subr.mxu0 0.0
    %479 = vmatpush1.msra.mxu0 0.0
    %480 = vmatprep.subr.mxu0 0.0
    %481 = vmatpush1.msra.mxu0 0.0
    %482 = vmatprep.subr.mxu0 0.0
    %483 = vmatpush1.msra.mxu0 0.0
    %484 = vmatprep.subr.mxu0 0.0
    %485 = vmatpush1.msra.mxu0 0.0
    %486 = vmatprep.subr.mxu0 0.0
    %487 = vmatpush1.msra.mxu0 0.0
    %488 = vmatprep.subr.mxu0 0.0
    %489 = vmatpush1.msra.mxu0 0.0
    %490 = vmatprep.subr.mxu0 0.0
    %491 = vmatpush1.msra.mxu0 0.0
    %492 = vmatprep.subr.mxu0 0.0
    %493 = vmatpush1.msra.mxu0 0.0
    %494 = vmatprep.subr.mxu0 0.0
    %495 = vmatpush1.msra.mxu0 0.0
    %496 = vmatprep.subr.mxu0 0.0
    %497 = vmatpush1.msra.mxu0 0.0
    %498 = vmatprep.subr.mxu0 0.0
    %499 = vmatpush1.msra.mxu0 0.0
    %500 = vmatprep.subr.mxu0 0.0
    %501 = vmatpush1.msra.mxu0 0.0
    %502 = vmatprep.subr.mxu0 0.0
    %503 = vmatpush1.msra.mxu0 0.0
    %504 = vmatprep.subr.mxu0 0.0
    %505 = vmatpush1.msra.mxu0 0.0
    %506 = vmatprep.subr.mxu0 0.0
    %507 = vmatpush1.msra.mxu0 0.0
    %508 = vmatprep.subr.mxu0 0.0
    %509 = vmatpush1.msra.mxu0 0.0
    %510 = vmatprep.subr.mxu0 0.0
    %511 = vmatpush1.msra.mxu0 0.0
    %512 = vmatprep.subr.mxu0 0.0
    %513 = vmatpush1.msra.mxu0 0.0
    %514 = vmatprep.subr.mxu0 0.0
    %515 = vmatpush1.msra.mxu0 0.0
    %516 = vmatprep.subr.mxu0 0.0
    %517 = vmatpush1.msra.mxu0 0.0
    %518 = vmatprep.subr.mxu0 0.0
    %519 = vmatpush1.msra.mxu0 0.0
    %520 = vmatprep.subr.mxu0 0.0
    %521 = vmatpush1.msra.mxu0 0.0
    %522 = vmatprep.subr.mxu0 0.0
    %523 = vmatpush1.msra.mxu0 0.0
    %524 = vmatprep.subr.mxu0 0.0
    %525 = vmatpush1.msra.mxu0 0.0
    %526 = vmatprep.subr.mxu0 0.0
    %527 = vmatpush1.msra.mxu0 0.0
    %528 = vmatprep.subr.mxu0 0.0
    %529 = vmatpush1.msra.mxu0 0.0
    %530 = vmatprep.mubr.f32.mxu0 0.0
    %531 = vmatmul.mubr.f32.gmra.mrb[0].mxu0 %v464
    %v532 = vpop.f32.mrb[0].mxu0
    %v533 = vadd.f32 %v284, %v532
    %v534 = vpop.f32.mrb[0].mxu0
    %535 = vdwg.mxu0
    %536 = vmatprep.subr.mxu0 0.0
    %537 = vmatpush1.msra.mxu0 %v31
    %538 = vmatprep.subr.mxu0 0.0
    %539 = vmatpush1.msra.mxu0 %v32
    %540 = vmatprep.subr.mxu0 0.0
    %541 = vmatpush1.msra.mxu0 %v33
    %542 = vmatprep.subr.mxu0 0.0
    %543 = vmatpush1.msra.mxu0 %v34
    %544 = vmatprep.subr.mxu0 0.0
    %545 = vmatpush1.msra.mxu0 0.0
    %546 = vmatprep.subr.mxu0 0.0
    %547 = vmatpush1.msra.mxu0 0.0
    %548 = vmatprep.subr.mxu0 0.0
    %549 = vmatpush1.msra.mxu0 0.0
    %550 = vmatprep.subr.mxu0 0.0
    %551 = vmatpush1.msra.mxu0 0.0
    %552 = vmatprep.subr.mxu0 0.0
    %553 = vmatpush1.msra.mxu0 0.0
    %554 = vmatprep.subr.mxu0 0.0
    %555 = vmatpush1.msra.mxu0 0.0
    %556 = vmatprep.subr.mxu0 0.0
    %557 = vmatpush1.msra.mxu0 0.0
    %558 = vmatprep.subr.mxu0 0.0
    %559 = vmatpush1.msra.mxu0 0.0
    %560 = vmatprep.subr.mxu0 0.0
    %561 = vmatpush1.msra.mxu0 0.0
    %562 = vmatprep.subr.mxu0 0.0
    %563 = vmatpush1.msra.mxu0 0.0
    %564 = vmatprep.subr.mxu0 0.0
    %565 = vmatpush1.msra.mxu0 0.0
    %566 = vmatprep.subr.mxu0 0.0
    %567 = vmatpush1.msra.mxu0 0.0
    %568 = vmatprep.subr.mxu0 0.0
    %569 = vmatpush1.msra.mxu0 0.0
    %570 = vmatprep.subr.mxu0 0.0
    %571 = vmatpush1.msra.mxu0 0.0
    %572 = vmatprep.subr.mxu0 0.0
    %573 = vmatpush1.msra.mxu0 0.0
    %574 = vmatprep.subr.mxu0 0.0
    %575 = vmatpush1.msra.mxu0 0.0
    %576 = vmatprep.subr.mxu0 0.0
    %577 = vmatpush1.msra.mxu0 0.0
    %578 = vmatprep.subr.mxu0 0.0
    %579 = vmatpush1.msra.mxu0 0.0
    %580 = vmatprep.subr.mxu0 0.0
    %581 = vmatpush1.msra.mxu0 0.0
    %582 = vmatprep.subr.mxu0 0.0
    %583 = vmatpush1.msra.mxu0 0.0
    %584 = vmatprep.subr.mxu0 0.0
    %585 = vmatpush1.msra.mxu0 0.0
    %586 = vmatprep.subr.mxu0 0.0
    %587 = vmatpush1.msra.mxu0 0.0
    %588 = vmatprep.subr.mxu0 0.0
    %589 = vmatpush1.msra.mxu0 0.0
    %590 = vmatprep.subr.mxu0 0.0
    %591 = vmatpush1.msra.mxu0 0.0
    %592 = vmatprep.subr.mxu0 0.0
    %593 = vmatpush1.msra.mxu0 0.0
    %594 = vmatprep.subr.mxu0 0.0
    %595 = vmatpush1.msra.mxu0 0.0
    %596 = vmatprep.subr.mxu0 0.0
    %597 = vmatpush1.msra.mxu0 0.0
    %598 = vmatprep.subr.mxu0 0.0
    %599 = vmatpush1.msra.mxu0 0.0
    %600 = vmatprep.mubr.f32.mxu0 0.0
    %601 = vmatmul.mubr.f32.gmra.mrb[0].mxu0 %v464
    %v602 = vpop.f32.mrb[0].mxu0
    %v603 = vadd.f32 0.0, %v602
    %v604 = vpop.f32.mrb[0].mxu0
    %605 = vdwg.mxu0
    %v607 = vrot.slane %v603, 4
    %v609 = vadd.f32 %v175, %v607
    %v610 = vmul.f32 %v609, 0.5
    %v611 = vsel %vm49, %v609, %v610
    %v612 = vtanh.pop %v611
    %v613 = vadd.f32 %v612, 1.0
    %v614 = vmul.f32 %v613, 0.5
    %v615 = vsel %vm49, %v612, %v614
    %v617 = vrot.slane %v453, 6
    %v619 = vmul.f32 %v615, %v617
    %621 = vrot.lane.b32.xlu0 %v615, 64
    %v622 = vpop.permute.xlu0 %621
    %v624 = vmul.f32 %v615, %v622
    %626 = vrot.lane.b32.xlu0 %v624, 32
    %v627 = vpop.permute.xlu0 %626
    %v629 = vadd.f32 %v619, %v627
    %v630 = vtanh.pop %v629
    %632 = vrot.lane.b32.xlu0 %v630, 64
    %v633 = vpop.permute.xlu0 %632
    %v635 = vmul.f32 %v615, %v633
    %v637 = vrot.slane %v635, 4
    %638 = vrot.lane.b32.xlu0 %v637, 32
    %v639 = vpop.permute.xlu0 %638
    %v640 = vsel %vm183, %v639, 0
    %642 = vmatprep.subr.mxu0 0.0
    %643 = vmatpush1.msra.mxu0 %v36
    %644 = vmatprep.subr.mxu0 0.0
    %645 = vmatpush1.msra.mxu0 %v37
    %646 = vmatprep.subr.mxu0 0.0
    %647 = vmatpush1.msra.mxu0 %v38
    %648 = vmatprep.subr.mxu0 0.0
    %649 = vmatpush1.msra.mxu0 %v39
    %650 = vmatprep.subr.mxu0 0.0
    %651 = vmatpush1.msra.mxu0 0.0
    %652 = vmatprep.subr.mxu0 0.0
    %653 = vmatpush1.msra.mxu0 0.0
    %654 = vmatprep.subr.mxu0 0.0
    %655 = vmatpush1.msra.mxu0 0.0
    %656 = vmatprep.subr.mxu0 0.0
    %657 = vmatpush1.msra.mxu0 0.0
    %658 = vmatprep.subr.mxu0 0.0
    %659 = vmatpush1.msra.mxu0 0.0
    %660 = vmatprep.subr.mxu0 0.0
    %661 = vmatpush1.msra.mxu0 0.0
    %662 = vmatprep.subr.mxu0 0.0
    %663 = vmatpush1.msra.mxu0 0.0
    %664 = vmatprep.subr.mxu0 0.0
    %665 = vmatpush1.msra.mxu0 0.0
    %666 = vmatprep.subr.mxu0 0.0
    %667 = vmatpush1.msra.mxu0 0.0
    %668 = vmatprep.subr.mxu0 0.0
    %669 = vmatpush1.msra.mxu0 0.0
    %670 = vmatprep.subr.mxu0 0.0
    %671 = vmatpush1.msra.mxu0 0.0
    %672 = vmatprep.subr.mxu0 0.0
    %673 = vmatpush1.msra.mxu0 0.0
    %674 = vmatprep.subr.mxu0 0.0
    %675 = vmatpush1.msra.mxu0 0.0
    %676 = vmatprep.subr.mxu0 0.0
    %677 = vmatpush1.msra.mxu0 0.0
    %678 = vmatprep.subr.mxu0 0.0
    %679 = vmatpush1.msra.mxu0 0.0
    %680 = vmatprep.subr.mxu0 0.0
    %681 = vmatpush1.msra.mxu0 0.0
    %682 = vmatprep.subr.mxu0 0.0
    %683 = vmatpush1.msra.mxu0 0.0
    %684 = vmatprep.subr.mxu0 0.0
    %685 = vmatpush1.msra.mxu0 0.0
    %686 = vmatprep.subr.mxu0 0.0
    %687 = vmatpush1.msra.mxu0 0.0
    %688 = vmatprep.subr.mxu0 0.0
    %689 = vmatpush1.msra.mxu0 0.0
    %690 = vmatprep.subr.mxu0 0.0
    %691 = vmatpush1.msra.mxu0 0.0
    %692 = vmatprep.subr.mxu0 0.0
    %693 = vmatpush1.msra.mxu0 0.0
    %694 = vmatprep.subr.mxu0 0.0
    %695 = vmatpush1.msra.mxu0 0.0
    %696 = vmatprep.subr.mxu0 0.0
    %697 = vmatpush1.msra.mxu0 0.0
    %698 = vmatprep.subr.mxu0 0.0
    %699 = vmatpush1.msra.mxu0 0.0
    %700 = vmatprep.subr.mxu0 0.0
    %701 = vmatpush1.msra.mxu0 0.0
    %702 = vmatprep.subr.mxu0 0.0
    %703 = vmatpush1.msra.mxu0 0.0
    %704 = vmatprep.subr.mxu0 0.0
    %705 = vmatpush1.msra.mxu0 0.0
    %706 = vmatprep.mubr.f32.mxu0 0.0
    %707 = vmatmul.mubr.f32.gmra.mrb[0].mxu0 %v640
    %v708 = vpop.f32.mrb[0].mxu0
    %v709 = vadd.f32 %v284, %v708
    %v710 = vpop.f32.mrb[0].mxu0
    %711 = vdwg.mxu0
    %712 = vmatprep.subr.mxu0 0.0
    %713 = vmatpush1.msra.mxu0 %v31
    %714 = vmatprep.subr.mxu0 0.0
    %715 = vmatpush1.msra.mxu0 %v32
    %716 = vmatprep.subr.mxu0 0.0
    %717 = vmatpush1.msra.mxu0 %v33
    %718 = vmatprep.subr.mxu0 0.0
    %719 = vmatpush1.msra.mxu0 %v34
    %720 = vmatprep.subr.mxu0 0.0
    %721 = vmatpush1.msra.mxu0 0.0
    %722 = vmatprep.subr.mxu0 0.0
    %723 = vmatpush1.msra.mxu0 0.0
    %724 = vmatprep.subr.mxu0 0.0
    %725 = vmatpush1.msra.mxu0 0.0
    %726 = vmatprep.subr.mxu0 0.0
    %727 = vmatpush1.msra.mxu0 0.0
    %728 = vmatprep.subr.mxu0 0.0
    %729 = vmatpush1.msra.mxu0 0.0
    %730 = vmatprep.subr.mxu0 0.0
    %731 = vmatpush1.msra.mxu0 0.0
    %732 = vmatprep.subr.mxu0 0.0
    %733 = vmatpush1.msra.mxu0 0.0
    %734 = vmatprep.subr.mxu0 0.0
    %735 = vmatpush1.msra.mxu0 0.0
    %736 = vmatprep.subr.mxu0 0.0
    %737 = vmatpush1.msra.mxu0 0.0
    %738 = vmatprep.subr.mxu0 0.0
    %739 = vmatpush1.msra.mxu0 0.0
    %740 = vmatprep.subr.mxu0 0.0
    %741 = vmatpush1.msra.mxu0 0.0
    %742 = vmatprep.subr.mxu0 0.0
    %743 = vmatpush1.msra.mxu0 0.0
    %744 = vmatprep.subr.mxu0 0.0
    %745 = vmatpush1.msra.mxu0 0.0
    %746 = vmatprep.subr.mxu0 0.0
    %747 = vmatpush1.msra.mxu0 0.0
    %748 = vmatprep.subr.mxu0 0.0
    %749 = vmatpush1.msra.mxu0 0.0
    %750 = vmatprep.subr.mxu0 0.0
    %751 = vmatpush1.msra.mxu0 0.0
    %752 = vmatprep.subr.mxu0 0.0
    %753 = vmatpush1.msra.mxu0 0.0
    %754 = vmatprep.subr.mxu0 0.0
    %755 = vmatpush1.msra.mxu0 0.0
    %756 = vmatprep.subr.mxu0 0.0
    %757 = vmatpush1.msra.mxu0 0.0
    %758 = vmatprep.subr.mxu0 0.0
    %759 = vmatpush1.msra.mxu0 0.0
    %760 = vmatprep.subr.mxu0 0.0
    %761 = vmatpush1.msra.mxu0 0.0
    %762 = vmatprep.subr.mxu0 0.0
    %763 = vmatpush1.msra.mxu0 0.0
    %764 = vmatprep.subr.mxu0 0.0
    %765 = vmatpush1.msra.mxu0 0.0
    %766 = vmatprep.subr.mxu0 0.0
    %767 = vmatpush1.msra.mxu0 0.0
    %768 = vmatprep.subr.mxu0 0.0
    %769 = vmatpush1.msra.mxu0 0.0
    %770 = vmatprep.subr.mxu0 0.0
    %771 = vmatpush1.msra.mxu0 0.0
    %772 = vmatprep.subr.mxu0 0.0
    %773 = vmatpush1.msra.mxu0 0.0
    %774 = vmatprep.subr.mxu0 0.0
    %775 = vmatpush1.msra.mxu0 0.0
    %776 = vmatprep.mubr.f32.mxu0 0.0
    %777 = vmatmul.mubr.f32.gmra.mrb[0].mxu0 %v640
    %v778 = vpop.f32.mrb[0].mxu0
    %v779 = vadd.f32 0.0, %v778
    %v780 = vpop.f32.mrb[0].mxu0
    %781 = vdwg.mxu0
    %v783 = vrot.slane %v779, 2
    %v785 = vadd.f32 %v175, %v783
    %v786 = vmul.f32 %v785, 0.5
    %v787 = vsel %vm49, %v785, %v786
    %v788 = vtanh.pop %v787
    %v789 = vadd.f32 %v788, 1.0
    %v790 = vmul.f32 %v789, 0.5
    %v791 = vsel %vm49, %v788, %v790
    %v793 = vrot.slane %v629, 6
    %v795 = vmul.f32 %v791, %v793
    %797 = vrot.lane.b32.xlu0 %v791, 64
    %v798 = vpop.permute.xlu0 %797
    %v800 = vmul.f32 %v791, %v798
    %802 = vrot.lane.b32.xlu0 %v800, 32
    %v803 = vpop.permute.xlu0 %802
    %v805 = vadd.f32 %v795, %v803
    %v806 = vtanh.pop %v805
    %808 = vrot.lane.b32.xlu0 %v806, 64
    %v809 = vpop.permute.xlu0 %808
    %v811 = vmul.f32 %v791, %v809
    %v813 = vrot.slane %v811, 6
    %814 = vrot.lane.b32.xlu0 %v813, 32
    %v815 = vpop.permute.xlu0 %814
    %v816 = vsel %vm183, %v815, 0
    %818 = vmatprep.subr.mxu0 0.0
    %819 = vmatpush1.msra.mxu0 %v36
    %820 = vmatprep.subr.mxu0 0.0
    %821 = vmatpush1.msra.mxu0 %v37
    %822 = vmatprep.subr.mxu0 0.0
    %823 = vmatpush1.msra.mxu0 %v38
    %824 = vmatprep.subr.mxu0 0.0
    %825 = vmatpush1.msra.mxu0 %v39
    %826 = vmatprep.subr.mxu0 0.0
    %827 = vmatpush1.msra.mxu0 0.0
    %828 = vmatprep.subr.mxu0 0.0
    %829 = vmatpush1.msra.mxu0 0.0
    %830 = vmatprep.subr.mxu0 0.0
    %831 = vmatpush1.msra.mxu0 0.0
    %832 = vmatprep.subr.mxu0 0.0
    %833 = vmatpush1.msra.mxu0 0.0
    %834 = vmatprep.subr.mxu0 0.0
    %835 = vmatpush1.msra.mxu0 0.0
    %836 = vmatprep.subr.mxu0 0.0
    %837 = vmatpush1.msra.mxu0 0.0
    %838 = vmatprep.subr.mxu0 0.0
    %839 = vmatpush1.msra.mxu0 0.0
    %840 = vmatprep.subr.mxu0 0.0
    %841 = vmatpush1.msra.mxu0 0.0
    %842 = vmatprep.subr.mxu0 0.0
    %843 = vmatpush1.msra.mxu0 0.0
    %844 = vmatprep.subr.mxu0 0.0
    %845 = vmatpush1.msra.mxu0 0.0
    %846 = vmatprep.subr.mxu0 0.0
    %847 = vmatpush1.msra.mxu0 0.0
    %848 = vmatprep.subr.mxu0 0.0
    %849 = vmatpush1.msra.mxu0 0.0
    %850 = vmatprep.subr.mxu0 0.0
    %851 = vmatpush1.msra.mxu0 0.0
    %852 = vmatprep.subr.mxu0 0.0
    %853 = vmatpush1.msra.mxu0 0.0
    %854 = vmatprep.subr.mxu0 0.0
    %855 = vmatpush1.msra.mxu0 0.0
    %856 = vmatprep.subr.mxu0 0.0
    %857 = vmatpush1.msra.mxu0 0.0
    %858 = vmatprep.subr.mxu0 0.0
    %859 = vmatpush1.msra.mxu0 0.0
    %860 = vmatprep.subr.mxu0 0.0
    %861 = vmatpush1.msra.mxu0 0.0
    %862 = vmatprep.subr.mxu0 0.0
    %863 = vmatpush1.msra.mxu0 0.0
    %864 = vmatprep.subr.mxu0 0.0
    %865 = vmatpush1.msra.mxu0 0.0
    %866 = vmatprep.subr.mxu0 0.0
    %867 = vmatpush1.msra.mxu0 0.0
    %868 = vmatprep.subr.mxu0 0.0
    %869 = vmatpush1.msra.mxu0 0.0
    %870 = vmatprep.subr.mxu0 0.0
    %871 = vmatpush1.msra.mxu0 0.0
    %872 = vmatprep.subr.mxu0 0.0
    %873 = vmatpush1.msra.mxu0 0.0
    %874 = vmatprep.subr.mxu0 0.0
    %875 = vmatpush1.msra.mxu0 0.0
    %876 = vmatprep.subr.mxu0 0.0
    %877 = vmatpush1.msra.mxu0 0.0
    %878 = vmatprep.subr.mxu0 0.0
    %879 = vmatpush1.msra.mxu0 0.0
    %880 = vmatprep.subr.mxu0 0.0
    %881 = vmatpush1.msra.mxu0 0.0
    %882 = vmatprep.mubr.f32.mxu0 0.0
    %883 = vmatmul.mubr.f32.gmra.mrb[0].mxu0 %v816
    %v884 = vpop.f32.mrb[0].mxu0
    %v885 = vadd.f32 %v284, %v884
    %v886 = vpop.f32.mrb[0].mxu0
    %887 = vdwg.mxu0
    %888 = vmatprep.subr.mxu0 0.0
    %889 = vmatpush1.msra.mxu0 %v31
    %890 = vmatprep.subr.mxu0 0.0
    %891 = vmatpush1.msra.mxu0 %v32
    %892 = vmatprep.subr.mxu0 0.0
    %893 = vmatpush1.msra.mxu0 %v33
    %894 = vmatprep.subr.mxu0 0.0
    %895 = vmatpush1.msra.mxu0 %v34
    %896 = vmatprep.subr.mxu0 0.0
    %897 = vmatpush1.msra.mxu0 0.0
    %898 = vmatprep.subr.mxu0 0.0
    %899 = vmatpush1.msra.mxu0 0.0
    %900 = vmatprep.subr.mxu0 0.0
    %901 = vmatpush1.msra.mxu0 0.0
    %902 = vmatprep.subr.mxu0 0.0
    %903 = vmatpush1.msra.mxu0 0.0
    %904 = vmatprep.subr.mxu0 0.0
    %905 = vmatpush1.msra.mxu0 0.0
    %906 = vmatprep.subr.mxu0 0.0
    %907 = vmatpush1.msra.mxu0 0.0
    %908 = vmatprep.subr.mxu0 0.0
    %909 = vmatpush1.msra.mxu0 0.0
    %910 = vmatprep.subr.mxu0 0.0
    %911 = vmatpush1.msra.mxu0 0.0
    %912 = vmatprep.subr.mxu0 0.0
    %913 = vmatpush1.msra.mxu0 0.0
    %914 = vmatprep.subr.mxu0 0.0
    %915 = vmatpush1.msra.mxu0 0.0
    %916 = vmatprep.subr.mxu0 0.0
    %917 = vmatpush1.msra.mxu0 0.0
    %918 = vmatprep.subr.mxu0 0.0
    %919 = vmatpush1.msra.mxu0 0.0
    %920 = vmatprep.subr.mxu0 0.0
    %921 = vmatpush1.msra.mxu0 0.0
    %922 = vmatprep.subr.mxu0 0.0
    %923 = vmatpush1.msra.mxu0 0.0
    %924 = vmatprep.subr.mxu0 0.0
    %925 = vmatpush1.msra.mxu0 0.0
    %926 = vmatprep.subr.mxu0 0.0
    %927 = vmatpush1.msra.mxu0 0.0
    %928 = vmatprep.subr.mxu0 0.0
    %929 = vmatpush1.msra.mxu0 0.0
    %930 = vmatprep.subr.mxu0 0.0
    %931 = vmatpush1.msra.mxu0 0.0
    %932 = vmatprep.subr.mxu0 0.0
    %933 = vmatpush1.msra.mxu0 0.0
    %934 = vmatprep.subr.mxu0 0.0
    %935 = vmatpush1.msra.mxu0 0.0
    %936 = vmatprep.subr.mxu0 0.0
    %937 = vmatpush1.msra.mxu0 0.0
    %938 = vmatprep.subr.mxu0 0.0
    %939 = vmatpush1.msra.mxu0 0.0
    %940 = vmatprep.subr.mxu0 0.0
    %941 = vmatpush1.msra.mxu0 0.0
    %942 = vmatprep.subr.mxu0 0.0
    %943 = vmatpush1.msra.mxu0 0.0
    %944 = vmatprep.subr.mxu0 0.0
    %945 = vmatpush1.msra.mxu0 0.0
    %946 = vmatprep.subr.mxu0 0.0
    %947 = vmatpush1.msra.mxu0 0.0
    %948 = vmatprep.subr.mxu0 0.0
    %949 = vmatpush1.msra.mxu0 0.0
    %950 = vmatprep.subr.mxu0 0.0
    %951 = vmatpush1.msra.mxu0 0.0
    %952 = vmatprep.mubr.f32.mxu0 0.0
    %953 = vmatmul.mubr.f32.gmra.mrb[0].mxu0 %v816
    %v954 = vpop.f32.mrb[0].mxu0
    %v955 = vadd.f32 0.0, %v954
    %v956 = vpop.f32.mrb[0].mxu0
    %957 = vdwg.mxu0
    %v958 = vadd.f32 %v180, %v955
    %v959 = vmul.f32 %v958, 0.5
    %v960 = vsel %vm49, %v958, %v959
    %v961 = vtanh.pop %v960
    %v962 = vadd.f32 %v961, 1.0
    %v963 = vmul.f32 %v962, 0.5
    %v964 = vsel %vm49, %v961, %v963
    %v966 = vrot.slane %v805, 6
    %v968 = vmul.f32 %v964, %v966
    %970 = vrot.lane.b32.xlu0 %v964, 64
    %v971 = vpop.permute.xlu0 %970
    %v973 = vmul.f32 %v964, %v971
    %975 = vrot.lane.b32.xlu0 %v973, 32
    %v976 = vpop.permute.xlu0 %975
    %v978 = vadd.f32 %v968, %v976
    %v979 = vtanh.pop %v978
    %981 = vrot.lane.b32.xlu0 %v979, 64
    %v982 = vpop.permute.xlu0 %981
    %v984 = vmul.f32 %v964, %v982
    %986 = vrot.lane.b32.xlu0 %v984, 32
    %v987 = vpop.permute.xlu0 %986
    %v988 = vsel %vm183, %v987, 0
    %990 = vmatprep.subr.mxu0 0.0
    %991 = vmatpush1.msra.mxu0 %v36
    %992 = vmatprep.subr.mxu0 0.0
    %993 = vmatpush1.msra.mxu0 %v37
    %994 = vmatprep.subr.mxu0 0.0
    %995 = vmatpush1.msra.mxu0 %v38
    %996 = vmatprep.subr.mxu0 0.0
    %997 = vmatpush1.msra.mxu0 %v39
    %998 = vmatprep.subr.mxu0 0.0
    %999 = vmatpush1.msra.mxu0 0.0
    %1000 = vmatprep.subr.mxu0 0.0
    %1001 = vmatpush1.msra.mxu0 0.0
    %1002 = vmatprep.subr.mxu0 0.0
    %1003 = vmatpush1.msra.mxu0 0.0
    %1004 = vmatprep.subr.mxu0 0.0
    %1005 = vmatpush1.msra.mxu0 0.0
    %1006 = vmatprep.subr.mxu0 0.0
    %1007 = vmatpush1.msra.mxu0 0.0
    %1008 = vmatprep.subr.mxu0 0.0
    %1009 = vmatpush1.msra.mxu0 0.0
    %1010 = vmatprep.subr.mxu0 0.0
    %1011 = vmatpush1.msra.mxu0 0.0
    %1012 = vmatprep.subr.mxu0 0.0
    %1013 = vmatpush1.msra.mxu0 0.0
    %1014 = vmatprep.subr.mxu0 0.0
    %1015 = vmatpush1.msra.mxu0 0.0
    %1016 = vmatprep.subr.mxu0 0.0
    %1017 = vmatpush1.msra.mxu0 0.0
    %1018 = vmatprep.subr.mxu0 0.0
    %1019 = vmatpush1.msra.mxu0 0.0
    %1020 = vmatprep.subr.mxu0 0.0
    %1021 = vmatpush1.msra.mxu0 0.0
    %1022 = vmatprep.subr.mxu0 0.0
    %1023 = vmatpush1.msra.mxu0 0.0
    %1024 = vmatprep.subr.mxu0 0.0
    %1025 = vmatpush1.msra.mxu0 0.0
    %1026 = vmatprep.subr.mxu0 0.0
    %1027 = vmatpush1.msra.mxu0 0.0
    %1028 = vmatprep.subr.mxu0 0.0
    %1029 = vmatpush1.msra.mxu0 0.0
    %1030 = vmatprep.subr.mxu0 0.0
    %1031 = vmatpush1.msra.mxu0 0.0
    %1032 = vmatprep.subr.mxu0 0.0
    %1033 = vmatpush1.msra.mxu0 0.0
    %1034 = vmatprep.subr.mxu0 0.0
    %1035 = vmatpush1.msra.mxu0 0.0
    %1036 = vmatprep.subr.mxu0 0.0
    %1037 = vmatpush1.msra.mxu0 0.0
    %1038 = vmatprep.subr.mxu0 0.0
    %1039 = vmatpush1.msra.mxu0 0.0
    %1040 = vmatprep.subr.mxu0 0.0
    %1041 = vmatpush1.msra.mxu0 0.0
    %1042 = vmatprep.subr.mxu0 0.0
    %1043 = vmatpush1.msra.mxu0 0.0
    %1044 = vmatprep.subr.mxu0 0.0
    %1045 = vmatpush1.msra.mxu0 0.0
    %1046 = vmatprep.subr.mxu0 0.0
    %1047 = vmatpush1.msra.mxu0 0.0
    %1048 = vmatprep.subr.mxu0 0.0
    %1049 = vmatpush1.msra.mxu0 0.0
    %1050 = vmatprep.subr.mxu0 0.0
    %1051 = vmatpush1.msra.mxu0 0.0
    %1052 = vmatprep.subr.mxu0 0.0
    %1053 = vmatpush1.msra.mxu0 0.0
    %1054 = vmatprep.mubr.f32.mxu0 0.0
    %1055 = vmatmul.mubr.f32.gmra.mrb[0].mxu0 %v988
    %v1056 = vpop.f32.mrb[0].mxu0
    %v1057 = vadd.f32 %v284, %v1056
    %v1058 = vpop.f32.mrb[0].mxu0
    %1059 = vdwg.mxu0
    %1060 = vmatprep.subr.mxu0 0.0
    %1061 = vmatpush1.msra.mxu0 %v31
    %1062 = vmatprep.subr.mxu0 0.0
    %1063 = vmatpush1.msra.mxu0 %v32
    %1064 = vmatprep.subr.mxu0 0.0
    %1065 = vmatpush1.msra.mxu0 %v33
    %1066 = vmatprep.subr.mxu0 0.0
    %1067 = vmatpush1.msra.mxu0 %v34
    %1068 = vmatprep.subr.mxu0 0.0
    %1069 = vmatpush1.msra.mxu0 0.0
    %1070 = vmatprep.subr.mxu0 0.0
    %1071 = vmatpush1.msra.mxu0 0.0
    %1072 = vmatprep.subr.mxu0 0.0
    %1073 = vmatpush1.msra.mxu0 0.0
    %1074 = vmatprep.subr.mxu0 0.0
    %1075 = vmatpush1.msra.mxu0 0.0
    %1076 = vmatprep.subr.mxu0 0.0
    %1077 = vmatpush1.msra.mxu0 0.0
    %1078 = vmatprep.subr.mxu0 0.0
    %1079 = vmatpush1.msra.mxu0 0.0
    %1080 = vmatprep.subr.mxu0 0.0
    %1081 = vmatpush1.msra.mxu0 0.0
    %1082 = vmatprep.subr.mxu0 0.0
    %1083 = vmatpush1.msra.mxu0 0.0
    %1084 = vmatprep.subr.mxu0 0.0
    %1085 = vmatpush1.msra.mxu0 0.0
    %1086 = vmatprep.subr.mxu0 0.0
    %1087 = vmatpush1.msra.mxu0 0.0
    %1088 = vmatprep.subr.mxu0 0.0
    %1089 = vmatpush1.msra.mxu0 0.0
    %1090 = vmatprep.subr.mxu0 0.0
    %1091 = vmatpush1.msra.mxu0 0.0
    %1092 = vmatprep.subr.mxu0 0.0
    %1093 = vmatpush1.msra.mxu0 0.0
    %1094 = vmatprep.subr.mxu0 0.0
    %1095 = vmatpush1.msra.mxu0 0.0
    %1096 = vmatprep.subr.mxu0 0.0
    %1097 = vmatpush1.msra.mxu0 0.0
    %1098 = vmatprep.subr.mxu0 0.0
    %1099 = vmatpush1.msra.mxu0 0.0
    %1100 = vmatprep.subr.mxu0 0.0
    %1101 = vmatpush1.msra.mxu0 0.0
    %1102 = vmatprep.subr.mxu0 0.0
    %1103 = vmatpush1.msra.mxu0 0.0
    %1104 = vmatprep.subr.mxu0 0.0
    %1105 = vmatpush1.msra.mxu0 0.0
    %1106 = vmatprep.subr.mxu0 0.0
    %1107 = vmatpush1.msra.mxu0 0.0
    %1108 = vmatprep.subr.mxu0 0.0
    %1109 = vmatpush1.msra.mxu0 0.0
    %1110 = vmatprep.subr.mxu0 0.0
    %1111 = vmatpush1.msra.mxu0 0.0
    %1112 = vmatprep.subr.mxu0 0.0
    %1113 = vmatpush1.msra.mxu0 0.0
    %1114 = vmatprep.subr.mxu0 0.0
    %1115 = vmatpush1.msra.mxu0 0.0
    %1116 = vmatprep.subr.mxu0 0.0
    %1117 = vmatpush1.msra.mxu0 0.0
    %1118 = vmatprep.subr.mxu0 0.0
    %1119 = vmatpush1.msra.mxu0 0.0
    %1120 = vmatprep.subr.mxu0 0.0
    %1121 = vmatpush1.msra.mxu0 0.0
    %1122 = vmatprep.subr.mxu0 0.0
    %1123 = vmatpush1.msra.mxu0 0.0
    %1124 = vmatprep.mubr.f32.mxu0 0.0
    %1125 = vmatmul.mubr.f32.gmra.mrb[0].mxu0 %v988
    %v1126 = vpop.f32.mrb[0].mxu0
    %v1127 = vadd.f32 0.0, %v1126
    %v1128 = vpop.f32.mrb[0].mxu0
    %1129 = vdwg.mxu0
    %v1131 = vrot.slane %v1127, 6
    %v1133 = vadd.f32 %v180, %v1131
    %v1134 = vmul.f32 %v1133, 0.5
    %v1135 = vsel %vm49, %v1133, %v1134
    %v1136 = vtanh.pop %v1135
    %v1137 = vadd.f32 %v1136, 1.0
    %v1138 = vmul.f32 %v1137, 0.5
    %v1139 = vsel %vm49, %v1136, %v1138
    %v1141 = vrot.slane %v978, 6
    %v1143 = vmul.f32 %v1139, %v1141
    %1145 = vrot.lane.b32.xlu0 %v1139, 64
    %v1146 = vpop.permute.xlu0 %1145
    %v1148 = vmul.f32 %v1139, %v1146
    %1150 = vrot.lane.b32.xlu0 %v1148, 32
    %v1151 = vpop.permute.xlu0 %1150
    %v1153 = vadd.f32 %v1143, %v1151
    %v1154 = vtanh.pop %v1153
    %1156 = vrot.lane.b32.xlu0 %v1154, 64
    %v1157 = vpop.permute.xlu0 %1156
    %v1159 = vmul.f32 %v1139, %v1157
    %v1161 = vrot.slane %v1159, 2
    %1162 = vrot.lane.b32.xlu0 %v1161, 32
    %v1163 = vpop.permute.xlu0 %1162
    %v1164 = vsel %vm183, %v1163, 0
    %1166 = vmatprep.subr.mxu0 0.0
    %1167 = vmatpush1.msra.mxu0 %v36
    %1168 = vmatprep.subr.mxu0 0.0
    %1169 = vmatpush1.msra.mxu0 %v37
    %1170 = vmatprep.subr.mxu0 0.0
    %1171 = vmatpush1.msra.mxu0 %v38
    %1172 = vmatprep.subr.mxu0 0.0
    %1173 = vmatpush1.msra.mxu0 %v39
    %1174 = vmatprep.subr.mxu0 0.0
    %1175 = vmatpush1.msra.mxu0 0.0
    %1176 = vmatprep.subr.mxu0 0.0
    %1177 = vmatpush1.msra.mxu0 0.0
    %1178 = vmatprep.subr.mxu0 0.0
    %1179 = vmatpush1.msra.mxu0 0.0
    %1180 = vmatprep.subr.mxu0 0.0
    %1181 = vmatpush1.msra.mxu0 0.0
    %1182 = vmatprep.subr.mxu0 0.0
    %1183 = vmatpush1.msra.mxu0 0.0
    %1184 = vmatprep.subr.mxu0 0.0
    %1185 = vmatpush1.msra.mxu0 0.0
    %1186 = vmatprep.subr.mxu0 0.0
    %1187 = vmatpush1.msra.mxu0 0.0
    %1188 = vmatprep.subr.mxu0 0.0
    %1189 = vmatpush1.msra.mxu0 0.0
    %1190 = vmatprep.subr.mxu0 0.0
    %1191 = vmatpush1.msra.mxu0 0.0
    %1192 = vmatprep.subr.mxu0 0.0
    %1193 = vmatpush1.msra.mxu0 0.0
    %1194 = vmatprep.subr.mxu0 0.0
    %1195 = vmatpush1.msra.mxu0 0.0
    %1196 = vmatprep.subr.mxu0 0.0
    %1197 = vmatpush1.msra.mxu0 0.0
    %1198 = vmatprep.subr.mxu0 0.0
    %1199 = vmatpush1.msra.mxu0 0.0
    %1200 = vmatprep.subr.mxu0 0.0
    %1201 = vmatpush1.msra.mxu0 0.0
    %1202 = vmatprep.subr.mxu0 0.0
    %1203 = vmatpush1.msra.mxu0 0.0
    %1204 = vmatprep.subr.mxu0 0.0
    %1205 = vmatpush1.msra.mxu0 0.0
    %1206 = vmatprep.subr.mxu0 0.0
    %1207 = vmatpush1.msra.mxu0 0.0
    %1208 = vmatprep.subr.mxu0 0.0
    %1209 = vmatpush1.msra.mxu0 0.0
    %1210 = vmatprep.subr.mxu0 0.0
    %1211 = vmatpush1.msra.mxu0 0.0
    %1212 = vmatprep.subr.mxu0 0.0
    %1213 = vmatpush1.msra.mxu0 0.0
    %1214 = vmatprep.subr.mxu0 0.0
    %1215 = vmatpush1.msra.mxu0 0.0
    %1216 = vmatprep.subr.mxu0 0.0
    %1217 = vmatpush1.msra.mxu0 0.0
    %1218 = vmatprep.subr.mxu0 0.0
    %1219 = vmatpush1.msra.mxu0 0.0
    %1220 = vmatprep.subr.mxu0 0.0
    %1221 = vmatpush1.msra.mxu0 0.0
    %1222 = vmatprep.subr.mxu0 0.0
    %1223 = vmatpush1.msra.mxu0 0.0
    %1224 = vmatprep.subr.mxu0 0.0
    %1225 = vmatpush1.msra.mxu0 0.0
    %1226 = vmatprep.subr.mxu0 0.0
    %1227 = vmatpush1.msra.mxu0 0.0
    %1228 = vmatprep.subr.mxu0 0.0
    %1229 = vmatpush1.msra.mxu0 0.0
    %1230 = vmatprep.mubr.f32.mxu0 0.0
    %1231 = vmatmul.mubr.f32.gmra.mrb[0].mxu0 %v1164
    %v1232 = vpop.f32.mrb[0].mxu0
    %v1233 = vadd.f32 %v284, %v1232
    %v1234 = vpop.f32.mrb[0].mxu0
    %1235 = vdwg.mxu0
    %1236 = vmatprep.subr.mxu0 0.0
    %1237 = vmatpush1.msra.mxu0 %v31
    %1238 = vmatprep.subr.mxu0 0.0
    %1239 = vmatpush1.msra.mxu0 %v32
    %1240 = vmatprep.subr.mxu0 0.0
    %1241 = vmatpush1.msra.mxu0 %v33
    %1242 = vmatprep.subr.mxu0 0.0
    %1243 = vmatpush1.msra.mxu0 %v34
    %1244 = vmatprep.subr.mxu0 0.0
    %1245 = vmatpush1.msra.mxu0 0.0
    %1246 = vmatprep.subr.mxu0 0.0
    %1247 = vmatpush1.msra.mxu0 0.0
    %1248 = vmatprep.subr.mxu0 0.0
    %1249 = vmatpush1.msra.mxu0 0.0
    %1250 = vmatprep.subr.mxu0 0.0
    %1251 = vmatpush1.msra.mxu0 0.0
    %1252 = vmatprep.subr.mxu0 0.0
    %1253 = vmatpush1.msra.mxu0 0.0
    %1254 = vmatprep.subr.mxu0 0.0
    %1255 = vmatpush1.msra.mxu0 0.0
    %1256 = vmatprep.subr.mxu0 0.0
    %1257 = vmatpush1.msra.mxu0 0.0
    %1258 = vmatprep.subr.mxu0 0.0
    %1259 = vmatpush1.msra.mxu0 0.0
    %1260 = vmatprep.subr.mxu0 0.0
    %1261 = vmatpush1.msra.mxu0 0.0
    %1262 = vmatprep.subr.mxu0 0.0
    %1263 = vmatpush1.msra.mxu0 0.0
    %1264 = vmatprep.subr.mxu0 0.0
    %1265 = vmatpush1.msra.mxu0 0.0
    %1266 = vmatprep.subr.mxu0 0.0
    %1267 = vmatpush1.msra.mxu0 0.0
    %1268 = vmatprep.subr.mxu0 0.0
    %1269 = vmatpush1.msra.mxu0 0.0
    %1270 = vmatprep.subr.mxu0 0.0
    %1271 = vmatpush1.msra.mxu0 0.0
    %1272 = vmatprep.subr.mxu0 0.0
    %1273 = vmatpush1.msra.mxu0 0.0
    %1274 = vmatprep.subr.mxu0 0.0
    %1275 = vmatpush1.msra.mxu0 0.0
    %1276 = vmatprep.subr.mxu0 0.0
    %1277 = vmatpush1.msra.mxu0 0.0
    %1278 = vmatprep.subr.mxu0 0.0
    %1279 = vmatpush1.msra.mxu0 0.0
    %1280 = vmatprep.subr.mxu0 0.0
    %1281 = vmatpush1.msra.mxu0 0.0
    %1282 = vmatprep.subr.mxu0 0.0
    %1283 = vmatpush1.msra.mxu0 0.0
    %1284 = vmatprep.subr.mxu0 0.0
    %1285 = vmatpush1.msra.mxu0 0.0
    %1286 = vmatprep.subr.mxu0 0.0
    %1287 = vmatpush1.msra.mxu0 0.0
    %1288 = vmatprep.subr.mxu0 0.0
    %1289 = vmatpush1.msra.mxu0 0.0
    %1290 = vmatprep.subr.mxu0 0.0
    %1291 = vmatpush1.msra.mxu0 0.0
    %1292 = vmatprep.subr.mxu0 0.0
    %1293 = vmatpush1.msra.mxu0 0.0
    %1294 = vmatprep.subr.mxu0 0.0
    %1295 = vmatpush1.msra.mxu0 0.0
    %1296 = vmatprep.subr.mxu0 0.0
    %1297 = vmatpush1.msra.mxu0 0.0
    %1298 = vmatprep.subr.mxu0 0.0
    %1299 = vmatpush1.msra.mxu0 0.0
    %1300 = vmatprep.mubr.f32.mxu0 0.0
    %1301 = vmatmul.mubr.f32.gmra.mrb[0].mxu0 %v1164
    %v1302 = vpop.f32.mrb[0].mxu0
    %v1303 = vadd.f32 0.0, %v1302
    %v1304 = vpop.f32.mrb[0].mxu0
    %1305 = vdwg.mxu0
    %v1307 = vrot.slane %v1303, 4
    %v1309 = vadd.f32 %v180, %v1307
    %v1310 = vmul.f32 %v1309, 0.5
    %v1311 = vsel %vm49, %v1309, %v1310
    %v1312 = vtanh.pop %v1311
    %v1313 = vadd.f32 %v1312, 1.0
    %v1314 = vmul.f32 %v1313, 0.5
    %v1315 = vsel %vm49, %v1312, %v1314
    %v1317 = vrot.slane %v1153, 6
    %v1319 = vmul.f32 %v1315, %v1317
    %1321 = vrot.lane.b32.xlu0 %v1315, 64
    %v1322 = vpop.permute.xlu0 %1321
    %v1324 = vmul.f32 %v1315, %v1322
    %1326 = vrot.lane.b32.xlu0 %v1324, 32
    %v1327 = vpop.permute.xlu0 %1326
    %v1329 = vadd.f32 %v1319, %v1327
    %v1330 = vtanh.pop %v1329
    %1332 = vrot.lane.b32.xlu0 %v1330, 64
    %v1333 = vpop.permute.xlu0 %1332
    %v1335 = vmul.f32 %v1315, %v1333
    %v1337 = vrot.slane %v1335, 4
    %1338 = vrot.lane.b32.xlu0 %v1337, 32
    %v1339 = vpop.permute.xlu0 %1338
    %v1340 = vsel %vm183, %v1339, 0
    %1342 = vmatprep.subr.mxu0 0.0
    %1343 = vmatpush1.msra.mxu0 %v36
    %1344 = vmatprep.subr.mxu0 0.0
    %1345 = vmatpush1.msra.mxu0 %v37
    %1346 = vmatprep.subr.mxu0 0.0
    %1347 = vmatpush1.msra.mxu0 %v38
    %1348 = vmatprep.subr.mxu0 0.0
    %1349 = vmatpush1.msra.mxu0 %v39
    %1350 = vmatprep.subr.mxu0 0.0
    %1351 = vmatpush1.msra.mxu0 0.0
    %1352 = vmatprep.subr.mxu0 0.0
    %1353 = vmatpush1.msra.mxu0 0.0
    %1354 = vmatprep.subr.mxu0 0.0
    %1355 = vmatpush1.msra.mxu0 0.0
    %1356 = vmatprep.subr.mxu0 0.0
    %1357 = vmatpush1.msra.mxu0 0.0
    %1358 = vmatprep.subr.mxu0 0.0
    %1359 = vmatpush1.msra.mxu0 0.0
    %1360 = vmatprep.subr.mxu0 0.0
    %1361 = vmatpush1.msra.mxu0 0.0
    %1362 = vmatprep.subr.mxu0 0.0
    %1363 = vmatpush1.msra.mxu0 0.0
    %1364 = vmatprep.subr.mxu0 0.0
    %1365 = vmatpush1.msra.mxu0 0.0
    %1366 = vmatprep.subr.mxu0 0.0
    %1367 = vmatpush1.msra.mxu0 0.0
    %1368 = vmatprep.subr.mxu0 0.0
    %1369 = vmatpush1.msra.mxu0 0.0
    %1370 = vmatprep.subr.mxu0 0.0
    %1371 = vmatpush1.msra.mxu0 0.0
    %1372 = vmatprep.subr.mxu0 0.0
    %1373 = vmatpush1.msra.mxu0 0.0
    %1374 = vmatprep.subr.mxu0 0.0
    %1375 = vmatpush1.msra.mxu0 0.0
    %1376 = vmatprep.subr.mxu0 0.0
    %1377 = vmatpush1.msra.mxu0 0.0
    %1378 = vmatprep.subr.mxu0 0.0
    %1379 = vmatpush1.msra.mxu0 0.0
    %1380 = vmatprep.subr.mxu0 0.0
    %1381 = vmatpush1.msra.mxu0 0.0
    %1382 = vmatprep.subr.mxu0 0.0
    %1383 = vmatpush1.msra.mxu0 0.0
    %1384 = vmatprep.subr.mxu0 0.0
    %1385 = vmatpush1.msra.mxu0 0.0
    %1386 = vmatprep.subr.mxu0 0.0
    %1387 = vmatpush1.msra.mxu0 0.0
    %1388 = vmatprep.subr.mxu0 0.0
    %1389 = vmatpush1.msra.mxu0 0.0
    %1390 = vmatprep.subr.mxu0 0.0
    %1391 = vmatpush1.msra.mxu0 0.0
    %1392 = vmatprep.subr.mxu0 0.0
    %1393 = vmatpush1.msra.mxu0 0.0
    %1394 = vmatprep.subr.mxu0 0.0
    %1395 = vmatpush1.msra.mxu0 0.0
    %1396 = vmatprep.subr.mxu0 0.0
    %1397 = vmatpush1.msra.mxu0 0.0
    %1398 = vmatprep.subr.mxu0 0.0
    %1399 = vmatpush1.msra.mxu0 0.0
    %1400 = vmatprep.subr.mxu0 0.0
    %1401 = vmatpush1.msra.mxu0 0.0
    %1402 = vmatprep.subr.mxu0 0.0
    %1403 = vmatpush1.msra.mxu0 0.0
    %1404 = vmatprep.subr.mxu0 0.0
    %1405 = vmatpush1.msra.mxu0 0.0
    %1406 = vmatprep.mubr.f32.mxu0 0.0
    %1407 = vmatmul.mubr.f32.gmra.mrb[0].mxu0 %v1340
    %v1408 = vpop.f32.mrb[0].mxu0
    %v1409 = vadd.f32 %v284, %v1408
    %v1410 = vpop.f32.mrb[0].mxu0
    %1411 = vdwg.mxu0
    %1412 = vmatprep.subr.mxu0 0.0
    %1413 = vmatpush1.msra.mxu0 %v31
    %1414 = vmatprep.subr.mxu0 0.0
    %1415 = vmatpush1.msra.mxu0 %v32
    %1416 = vmatprep.subr.mxu0 0.0
    %1417 = vmatpush1.msra.mxu0 %v33
    %1418 = vmatprep.subr.mxu0 0.0
    %1419 = vmatpush1.msra.mxu0 %v34
    %1420 = vmatprep.subr.mxu0 0.0
    %1421 = vmatpush1.msra.mxu0 0.0
    %1422 = vmatprep.subr.mxu0 0.0
    %1423 = vmatpush1.msra.mxu0 0.0
    %1424 = vmatprep.subr.mxu0 0.0
    %1425 = vmatpush1.msra.mxu0 0.0
    %1426 = vmatprep.subr.mxu0 0.0
    %1427 = vmatpush1.msra.mxu0 0.0
    %1428 = vmatprep.subr.mxu0 0.0
    %1429 = vmatpush1.msra.mxu0 0.0
    %1430 = vmatprep.subr.mxu0 0.0
    %1431 = vmatpush1.msra.mxu0 0.0
    %1432 = vmatprep.subr.mxu0 0.0
    %1433 = vmatpush1.msra.mxu0 0.0
    %1434 = vmatprep.subr.mxu0 0.0
    %1435 = vmatpush1.msra.mxu0 0.0
    %1436 = vmatprep.subr.mxu0 0.0
    %1437 = vmatpush1.msra.mxu0 0.0
    %1438 = vmatprep.subr.mxu0 0.0
    %1439 = vmatpush1.msra.mxu0 0.0
    %1440 = vmatprep.subr.mxu0 0.0
    %1441 = vmatpush1.msra.mxu0 0.0
    %1442 = vmatprep.subr.mxu0 0.0
    %1443 = vmatpush1.msra.mxu0 0.0
    %1444 = vmatprep.subr.mxu0 0.0
    %1445 = vmatpush1.msra.mxu0 0.0
    %1446 = vmatprep.subr.mxu0 0.0
    %1447 = vmatpush1.msra.mxu0 0.0
    %1448 = vmatprep.subr.mxu0 0.0
    %1449 = vmatpush1.msra.mxu0 0.0
    %1450 = vmatprep.subr.mxu0 0.0
    %1451 = vmatpush1.msra.mxu0 0.0
    %1452 = vmatprep.subr.mxu0 0.0
    %1453 = vmatpush1.msra.mxu0 0.0
    %1454 = vmatprep.subr.mxu0 0.0
    %1455 = vmatpush1.msra.mxu0 0.0
    %1456 = vmatprep.subr.mxu0 0.0
    %1457 = vmatpush1.msra.mxu0 0.0
    %1458 = vmatprep.subr.mxu0 0.0
    %1459 = vmatpush1.msra.mxu0 0.0
    %1460 = vmatprep.subr.mxu0 0.0
    %1461 = vmatpush1.msra.mxu0 0.0
    %1462 = vmatprep.subr.mxu0 0.0
    %1463 = vmatpush1.msra.mxu0 0.0
    %1464 = vmatprep.subr.mxu0 0.0
    %1465 = vmatpush1.msra.mxu0 0.0
    %1466 = vmatprep.subr.mxu0 0.0
    %1467 = vmatpush1.msra.mxu0 0.0
    %1468 = vmatprep.subr.mxu0 0.0
    %1469 = vmatpush1.msra.mxu0 0.0
    %1470 = vmatprep.subr.mxu0 0.0
    %1471 = vmatpush1.msra.mxu0 0.0
    %1472 = vmatprep.subr.mxu0 0.0
    %1473 = vmatpush1.msra.mxu0 0.0
    %1474 = vmatprep.subr.mxu0 0.0
    %1475 = vmatpush1.msra.mxu0 0.0
    %1476 = vmatprep.mubr.f32.mxu0 0.0
    %1477 = vmatmul.mubr.f32.gmra.mrb[0].mxu0 %v1340
    %v1478 = vpop.f32.mrb[0].mxu0
    %v1479 = vadd.f32 0.0, %v1478
    %v1480 = vpop.f32.mrb[0].mxu0
    %1481 = vdwg.mxu0
    %v1483 = vrot.slane %v1479, 2
    %v1485 = vadd.f32 %v180, %v1483
    %v1486 = vmul.f32 %v1485, 0.5
    %v1487 = vsel %vm49, %v1485, %v1486
    %v1488 = vtanh.pop %v1487
    %v1489 = vadd.f32 %v1488, 1.0
    %v1490 = vmul.f32 %v1489, 0.5
    %v1491 = vsel %vm49, %v1488, %v1490
    %v1493 = vrot.slane %v1329, 6
    %v1495 = vmul.f32 %v1491, %v1493
    %1497 = vrot.lane.b32.xlu0 %v1491, 64
    %v1498 = vpop.permute.xlu0 %1497
    %v1500 = vmul.f32 %v1491, %v1498
    %1502 = vrot.lane.b32.xlu0 %v1500, 32
    %v1503 = vpop.permute.xlu0 %1502
    %v1505 = vadd.f32 %v1495, %v1503
    %v1506 = vtanh.pop %v1505
    %1508 = vrot.lane.b32.xlu0 %v1506, 64
    %v1509 = vpop.permute.xlu0 %1508
    %v1511 = vmul.f32 %v1491, %v1509
    %v1513 = vrot.slane %v1511, 6
    %1514 = vrot.lane.b32.xlu0 %v1513, 32
    %v1515 = vpop.permute.xlu0 %1514
    %v1516 = vsel %vm183, %v1515, 0
    %1518 = vmatprep.subr.mxu0 0.0
    %1519 = vmatpush1.msra.mxu0 %v36
    %1520 = vmatprep.subr.mxu0 0.0
    %1521 = vmatpush1.msra.mxu0 %v37
    %1522 = vmatprep.subr.mxu0 0.0
    %1523 = vmatpush1.msra.mxu0 %v38
    %1524 = vmatprep.subr.mxu0 0.0
    %1525 = vmatpush1.msra.mxu0 %v39
    %1526 = vmatprep.subr.mxu0 0.0
    %1527 = vmatpush1.msra.mxu0 0.0
    %1528 = vmatprep.subr.mxu0 0.0
    %1529 = vmatpush1.msra.mxu0 0.0
    %1530 = vmatprep.subr.mxu0 0.0
    %1531 = vmatpush1.msra.mxu0 0.0
    %1532 = vmatprep.subr.mxu0 0.0
    %1533 = vmatpush1.msra.mxu0 0.0
    %1534 = vmatprep.subr.mxu0 0.0
    %1535 = vmatpush1.msra.mxu0 0.0
    %1536 = vmatprep.subr.mxu0 0.0
    %1537 = vmatpush1.msra.mxu0 0.0
    %1538 = vmatprep.subr.mxu0 0.0
    %1539 = vmatpush1.msra.mxu0 0.0
    %1540 = vmatprep.subr.mxu0 0.0
    %1541 = vmatpush1.msra.mxu0 0.0
    %1542 = vmatprep.subr.mxu0 0.0
    %1543 = vmatpush1.msra.mxu0 0.0
    %1544 = vmatprep.subr.mxu0 0.0
    %1545 = vmatpush1.msra.mxu0 0.0
    %1546 = vmatprep.subr.mxu0 0.0
    %1547 = vmatpush1.msra.mxu0 0.0
    %1548 = vmatprep.subr.mxu0 0.0
    %1549 = vmatpush1.msra.mxu0 0.0
    %1550 = vmatprep.subr.mxu0 0.0
    %1551 = vmatpush1.msra.mxu0 0.0
    %1552 = vmatprep.subr.mxu0 0.0
    %1553 = vmatpush1.msra.mxu0 0.0
    %1554 = vmatprep.subr.mxu0 0.0
    %1555 = vmatpush1.msra.mxu0 0.0
    %1556 = vmatprep.subr.mxu0 0.0
    %1557 = vmatpush1.msra.mxu0 0.0
    %1558 = vmatprep.subr.mxu0 0.0
    %1559 = vmatpush1.msra.mxu0 0.0
    %1560 = vmatprep.subr.mxu0 0.0
    %1561 = vmatpush1.msra.mxu0 0.0
    %1562 = vmatprep.subr.mxu0 0.0
    %1563 = vmatpush1.msra.mxu0 0.0
    %1564 = vmatprep.subr.mxu0 0.0
    %1565 = vmatpush1.msra.mxu0 0.0
    %1566 = vmatprep.subr.mxu0 0.0
    %1567 = vmatpush1.msra.mxu0 0.0
    %1568 = vmatprep.subr.mxu0 0.0
    %1569 = vmatpush1.msra.mxu0 0.0
    %1570 = vmatprep.subr.mxu0 0.0
    %1571 = vmatpush1.msra.mxu0 0.0
    %1572 = vmatprep.subr.mxu0 0.0
    %1573 = vmatpush1.msra.mxu0 0.0
    %1574 = vmatprep.subr.mxu0 0.0
    %1575 = vmatpush1.msra.mxu0 0.0
    %1576 = vmatprep.subr.mxu0 0.0
    %1577 = vmatpush1.msra.mxu0 0.0
    %1578 = vmatprep.subr.mxu0 0.0
    %1579 = vmatpush1.msra.mxu0 0.0
    %1580 = vmatprep.subr.mxu0 0.0
    %1581 = vmatpush1.msra.mxu0 0.0
    %1582 = vmatprep.mubr.f32.mxu0 0.0
    %1583 = vmatmul.mubr.f32.gmra.mrb[0].mxu0 %v1516
    %v1584 = vpop.f32.mrb[0].mxu0
    %v1585 = vadd.f32 %v284, %v1584
    %v1586 = vpop.f32.mrb[0].mxu0
    %1587 = vdwg.mxu0
    %1588 = vmatprep.subr.mxu0 0.0
    %1589 = vmatpush1.msra.mxu0 %v40
    %1590 = vmatprep.subr.mxu0 0.0
    %1591 = vmatpush1.msra.mxu0 %v41
    %1592 = vmatprep.subr.mxu0 0.0
    %1593 = vmatpush1.msra.mxu0 %v42
    %1594 = vmatprep.subr.mxu0 0.0
    %1595 = vmatpush1.msra.mxu0 %v43
    %1596 = vmatprep.subr.mxu0 0.0
    %1597 = vmatpush1.msra.mxu0 0.0
    %1598 = vmatprep.subr.mxu0 0.0
    %1599 = vmatpush1.msra.mxu0 0.0
    %1600 = vmatprep.subr.mxu0 0.0
    %1601 = vmatpush1.msra.mxu0 0.0
    %1602 = vmatprep.subr.mxu0 0.0
    %1603 = vmatpush1.msra.mxu0 0.0
    %1604 = vmatprep.subr.mxu0 0.0
    %1605 = vmatpush1.msra.mxu0 0.0
    %1606 = vmatprep.subr.mxu0 0.0
    %1607 = vmatpush1.msra.mxu0 0.0
    %1608 = vmatprep.subr.mxu0 0.0
    %1609 = vmatpush1.msra.mxu0 0.0
    %1610 = vmatprep.subr.mxu0 0.0
    %1611 = vmatpush1.msra.mxu0 0.0
    %1612 = vmatprep.subr.mxu0 0.0
    %1613 = vmatpush1.msra.mxu0 0.0
    %1614 = vmatprep.subr.mxu0 0.0
    %1615 = vmatpush1.msra.mxu0 0.0
    %1616 = vmatprep.subr.mxu0 0.0
    %1617 = vmatpush1.msra.mxu0 0.0
    %1618 = vmatprep.subr.mxu0 0.0
    %1619 = vmatpush1.msra.mxu0 0.0
    %1620 = vmatprep.subr.mxu0 0.0
    %1621 = vmatpush1.msra.mxu0 0.0
    %1622 = vmatprep.subr.mxu0 0.0
    %1623 = vmatpush1.msra.mxu0 0.0
    %1624 = vmatprep.subr.mxu0 0.0
    %1625 = vmatpush1.msra.mxu0 0.0
    %1626 = vmatprep.subr.mxu0 0.0
    %1627 = vmatpush1.msra.mxu0 0.0
    %1628 = vmatprep.subr.mxu0 0.0
    %1629 = vmatpush1.msra.mxu0 0.0
    %1630 = vmatprep.subr.mxu0 0.0
    %1631 = vmatpush1.msra.mxu0 0.0
    %1632 = vmatprep.subr.mxu0 0.0
    %1633 = vmatpush1.msra.mxu0 0.0
    %1634 = vmatprep.subr.mxu0 0.0
    %1635 = vmatpush1.msra.mxu0 0.0
    %1636 = vmatprep.subr.mxu0 0.0
    %1637 = vmatpush1.msra.mxu0 0.0
    %1638 = vmatprep.subr.mxu0 0.0
    %1639 = vmatpush1.msra.mxu0 0.0
    %1640 = vmatprep.subr.mxu0 0.0
    %1641 = vmatpush1.msra.mxu0 0.0
    %1642 = vmatprep.subr.mxu0 0.0
    %1643 = vmatpush1.msra.mxu0 0.0
    %1644 = vmatprep.subr.mxu0 0.0
    %1645 = vmatpush1.msra.mxu0 0.0
    %1646 = vmatprep.subr.mxu0 0.0
    %1647 = vmatpush1.msra.mxu0 0.0
    %1648 = vmatprep.subr.mxu0 0.0
    %1649 = vmatpush1.msra.mxu0 0.0
    %1650 = vmatprep.subr.mxu0 0.0
    %1651 = vmatpush1.msra.mxu0 0.0
    %1652 = vmatprep.mubr.f32.mxu0 0.0
    %1653 = vmatmul.mubr.f32.gmra.mrb[0].mxu0 %v185
    %v1654 = vpop.f32.mrb[0].mxu0
    %v1655 = vadd.f32 0.0, %v1654
    %v1656 = vpop.f32.mrb[0].mxu0
    %1657 = vdwg.mxu0
    %v1658 = vadd.f32 %v357, %v1655
    %v1659 = vmul.f32 %v1658, 0.5
    %v1660 = vsel %vm49, %v1658, %v1659
    %v1661 = vtanh.pop %v1660
    %v1662 = vadd.f32 %v1661, 1.0
    %v1663 = vmul.f32 %v1662, 0.5
    %v1664 = vsel %vm49, %v1661, %v1663
    %v1665 = vmul.f32 %v1664, 0.0
    %1667 = vrot.lane.b32.xlu0 %v1664, 64
    %v1668 = vpop.permute.xlu0 %1667
    %v1670 = vmul.f32 %v1664, %v1668
    %1672 = vrot.lane.b32.xlu0 %v1670, 32
    %v1673 = vpop.permute.xlu0 %1672
    %v1675 = vadd.f32 %v1665, %v1673
    %v1676 = vtanh.pop %v1675
    %1678 = vrot.lane.b32.xlu0 %v1676, 64
    %v1679 = vpop.permute.xlu0 %1678
    %v1681 = vmul.f32 %v1664, %v1679
    %1683 = vrot.lane.b32.xlu0 %v1681, 32
    %v1684 = vpop.permute.xlu0 %1683
    %v1685 = vsel %vm183, %v1684, 0
    %1687 = vmatprep.subr.mxu0 0.0
    %1688 = vmatpush1.msra.mxu0 %v40
    %1689 = vmatprep.subr.mxu0 0.0
    %1690 = vmatpush1.msra.mxu0 %v41
    %1691 = vmatprep.subr.mxu0 0.0
    %1692 = vmatpush1.msra.mxu0 %v42
    %1693 = vmatprep.subr.mxu0 0.0
    %1694 = vmatpush1.msra.mxu0 %v43
    %1695 = vmatprep.subr.mxu0 0.0
    %1696 = vmatpush1.msra.mxu0 0.0
    %1697 = vmatprep.subr.mxu0 0.0
    %1698 = vmatpush1.msra.mxu0 0.0
    %1699 = vmatprep.subr.mxu0 0.0
    %1700 = vmatpush1.msra.mxu0 0.0
    %1701 = vmatprep.subr.mxu0 0.0
    %1702 = vmatpush1.msra.mxu0 0.0
    %1703 = vmatprep.subr.mxu0 0.0
    %1704 = vmatpush1.msra.mxu0 0.0
    %1705 = vmatprep.subr.mxu0 0.0
    %1706 = vmatpush1.msra.mxu0 0.0
    %1707 = vmatprep.subr.mxu0 0.0
    %1708 = vmatpush1.msra.mxu0 0.0
    %1709 = vmatprep.subr.mxu0 0.0
    %1710 = vmatpush1.msra.mxu0 0.0
    %1711 = vmatprep.subr.mxu0 0.0
    %1712 = vmatpush1.msra.mxu0 0.0
    %1713 = vmatprep.subr.mxu0 0.0
    %1714 = vmatpush1.msra.mxu0 0.0
    %1715 = vmatprep.subr.mxu0 0.0
    %1716 = vmatpush1.msra.mxu0 0.0
    %1717 = vmatprep.subr.mxu0 0.0
    %1718 = vmatpush1.msra.mxu0 0.0
    %1719 = vmatprep.subr.mxu0 0.0
    %1720 = vmatpush1.msra.mxu0 0.0
    %1721 = vmatprep.subr.mxu0 0.0
    %1722 = vmatpush1.msra.mxu0 0.0
    %1723 = vmatprep.subr.mxu0 0.0
    %1724 = vmatpush1.msra.mxu0 0.0
    %1725 = vmatprep.subr.mxu0 0.0
    %1726 = vmatpush1.msra.mxu0 0.0
    %1727 = vmatprep.subr.mxu0 0.0
    %1728 = vmatpush1.msra.mxu0 0.0
    %1729 = vmatprep.subr.mxu0 0.0
    %1730 = vmatpush1.msra.mxu0 0.0
    %1731 = vmatprep.subr.mxu0 0.0
    %1732 = vmatpush1.msra.mxu0 0.0
    %1733 = vmatprep.subr.mxu0 0.0
    %1734 = vmatpush1.msra.mxu0 0.0
    %1735 = vmatprep.subr.mxu0 0.0
    %1736 = vmatpush1.msra.mxu0 0.0
    %1737 = vmatprep.subr.mxu0 0.0
    %1738 = vmatpush1.msra.mxu0 0.0
    %1739 = vmatprep.subr.mxu0 0.0
    %1740 = vmatpush1.msra.mxu0 0.0
    %1741 = vmatprep.subr.mxu0 0.0
    %1742 = vmatpush1.msra.mxu0 0.0
    %1743 = vmatprep.subr.mxu0 0.0
    %1744 = vmatpush1.msra.mxu0 0.0
    %1745 = vmatprep.subr.mxu0 0.0
    %1746 = vmatpush1.msra.mxu0 0.0
    %1747 = vmatprep.subr.mxu0 0.0
    %1748 = vmatpush1.msra.mxu0 0.0
    %1749 = vmatprep.subr.mxu0 0.0
    %1750 = vmatpush1.msra.mxu0 0.0
    %1751 = vmatprep.mubr.f32.mxu0 0.0
    %1752 = vmatmul.mubr.f32.gmra.mrb[0].mxu0 %v1685
    %v1753 = vpop.f32.mrb[0].mxu0
    %v1754 = vadd.f32 0.0, %v1753
    %v1755 = vpop.f32.mrb[0].mxu0
    %1756 = vdwg.mxu0
    %v1757 = vadd.f32 %v533, %v1754
    %v1758 = vmul.f32 %v1757, 0.5
    %v1759 = vsel %vm49, %v1757, %v1758
    %v1760 = vtanh.pop %v1759
    %v1761 = vadd.f32 %v1760, 1.0
    %v1762 = vmul.f32 %v1761, 0.5
    %v1763 = vsel %vm49, %v1760, %v1762
    %v1764 = vmul.f32 %v1763, %v1675
    %1766 = vrot.lane.b32.xlu0 %v1763, 64
    %v1767 = vpop.permute.xlu0 %1766
    %v1769 = vmul.f32 %v1763, %v1767
    %1771 = vrot.lane.b32.xlu0 %v1769, 32
    %v1772 = vpop.permute.xlu0 %1771
    %v1774 = vadd.f32 %v1764, %v1772
    %v1775 = vtanh.pop %v1774
    %1777 = vrot.lane.b32.xlu0 %v1775, 64
    %v1778 = vpop.permute.xlu0 %1777
    %v1780 = vmul.f32 %v1763, %v1778
    %1782 = vrot.lane.b32.xlu0 %v1780, 32
    %v1783 = vpop.permute.xlu0 %1782
    %v1784 = vsel %vm183, %v1783, 0
    %1786 = vmatprep.subr.mxu0 0.0
    %1787 = vmatpush1.msra.mxu0 %v40
    %1788 = vmatprep.subr.mxu0 0.0
    %1789 = vmatpush1.msra.mxu0 %v41
    %1790 = vmatprep.subr.mxu0 0.0
    %1791 = vmatpush1.msra.mxu0 %v42
    %1792 = vmatprep.subr.mxu0 0.0
    %1793 = vmatpush1.msra.mxu0 %v43
    %1794 = vmatprep.subr.mxu0 0.0
    %1795 = vmatpush1.msra.mxu0 0.0
    %1796 = vmatprep.subr.mxu0 0.0
    %1797 = vmatpush1.msra.mxu0 0.0
    %1798 = vmatprep.subr.mxu0 0.0
    %1799 = vmatpush1.msra.mxu0 0.0
    %1800 = vmatprep.subr.mxu0 0.0
    %1801 = vmatpush1.msra.mxu0 0.0
    %1802 = vmatprep.subr.mxu0 0.0
    %1803 = vmatpush1.msra.mxu0 0.0
    %1804 = vmatprep.subr.mxu0 0.0
    %1805 = vmatpush1.msra.mxu0 0.0
    %1806 = vmatprep.subr.mxu0 0.0
    %1807 = vmatpush1.msra.mxu0 0.0
    %1808 = vmatprep.subr.mxu0 0.0
    %1809 = vmatpush1.msra.mxu0 0.0
    %1810 = vmatprep.subr.mxu0 0.0
    %1811 = vmatpush1.msra.mxu0 0.0
    %1812 = vmatprep.subr.mxu0 0.0
    %1813 = vmatpush1.msra.mxu0 0.0
    %1814 = vmatprep.subr.mxu0 0.0
    %1815 = vmatpush1.msra.mxu0 0.0
    %1816 = vmatprep.subr.mxu0 0.0
    %1817 = vmatpush1.msra.mxu0 0.0
    %1818 = vmatprep.subr.mxu0 0.0
    %1819 = vmatpush1.msra.mxu0 0.0
    %1820 = vmatprep.subr.mxu0 0.0
    %1821 = vmatpush1.msra.mxu0 0.0
    %1822 = vmatprep.subr.mxu0 0.0
    %1823 = vmatpush1.msra.mxu0 0.0
    %1824 = vmatprep.subr.mxu0 0.0
    %1825 = vmatpush1.msra.mxu0 0.0
    %1826 = vmatprep.subr.mxu0 0.0
    %1827 = vmatpush1.msra.mxu0 0.0
    %1828 = vmatprep.subr.mxu0 0.0
    %1829 = vmatpush1.msra.mxu0 0.0
    %1830 = vmatprep.subr.mxu0 0.0
    %1831 = vmatpush1.msra.mxu0 0.0
    %1832 = vmatprep.subr.mxu0 0.0
    %1833 = vmatpush1.msra.mxu0 0.0
    %1834 = vmatprep.subr.mxu0 0.0
    %1835 = vmatpush1.msra.mxu0 0.0
    %1836 = vmatprep.subr.mxu0 0.0
    %1837 = vmatpush1.msra.mxu0 0.0
    %1838 = vmatprep.subr.mxu0 0.0
    %1839 = vmatpush1.msra.mxu0 0.0
    %1840 = vmatprep.subr.mxu0 0.0
    %1841 = vmatpush1.msra.mxu0 0.0
    %1842 = vmatprep.subr.mxu0 0.0
    %1843 = vmatpush1.msra.mxu0 0.0
    %1844 = vmatprep.subr.mxu0 0.0
    %1845 = vmatpush1.msra.mxu0 0.0
    %1846 = vmatprep.subr.mxu0 0.0
    %1847 = vmatpush1.msra.mxu0 0.0
    %1848 = vmatprep.subr.mxu0 0.0
    %1849 = vmatpush1.msra.mxu0 0.0
    %1850 = vmatprep.mubr.f32.mxu0 0.0
    %1851 = vmatmul.mubr.f32.gmra.mrb[0].mxu0 %v1784
    %v1852 = vpop.f32.mrb[0].mxu0
    %v1853 = vadd.f32 0.0, %v1852
    %v1854 = vpop.f32.mrb[0].mxu0
    %1855 = vdwg.mxu0
    %v1856 = vadd.f32 %v709, %v1853
    %v1857 = vmul.f32 %v1856, 0.5
    %v1858 = vsel %vm49, %v1856, %v1857
    %v1859 = vtanh.pop %v1858
    %v1860 = vadd.f32 %v1859, 1.0
    %v1861 = vmul.f32 %v1860, 0.5
    %v1862 = vsel %vm49, %v1859, %v1861
    %v1863 = vmul.f32 %v1862, %v1774
    %1865 = vrot.lane.b32.xlu0 %v1862, 64
    %v1866 = vpop.permute.xlu0 %1865
    %v1868 = vmul.f32 %v1862, %v1866
    %1870 = vrot.lane.b32.xlu0 %v1868, 32
    %v1871 = vpop.permute.xlu0 %1870
    %v1873 = vadd.f32 %v1863, %v1871
    %v1874 = vtanh.pop %v1873
    %1876 = vrot.lane.b32.xlu0 %v1874, 64
    %v1877 = vpop.permute.xlu0 %1876
    %v1879 = vmul.f32 %v1862, %v1877
    %1881 = vrot.lane.b32.xlu0 %v1879, 32
    %v1882 = vpop.permute.xlu0 %1881
    %v1883 = vsel %vm183, %v1882, 0
    %1885 = vmatprep.subr.mxu0 0.0
    %1886 = vmatpush1.msra.mxu0 %v40
    %1887 = vmatprep.subr.mxu0 0.0
    %1888 = vmatpush1.msra.mxu0 %v41
    %1889 = vmatprep.subr.mxu0 0.0
    %1890 = vmatpush1.msra.mxu0 %v42
    %1891 = vmatprep.subr.mxu0 0.0
    %1892 = vmatpush1.msra.mxu0 %v43
    %1893 = vmatprep.subr.mxu0 0.0
    %1894 = vmatpush1.msra.mxu0 0.0
    %1895 = vmatprep.subr.mxu0 0.0
    %1896 = vmatpush1.msra.mxu0 0.0
    %1897 = vmatprep.subr.mxu0 0.0
    %1898 = vmatpush1.msra.mxu0 0.0
    %1899 = vmatprep.subr.mxu0 0.0
    %1900 = vmatpush1.msra.mxu0 0.0
    %1901 = vmatprep.subr.mxu0 0.0
    %1902 = vmatpush1.msra.mxu0 0.0
    %1903 = vmatprep.subr.mxu0 0.0
    %1904 = vmatpush1.msra.mxu0 0.0
    %1905 = vmatprep.subr.mxu0 0.0
    %1906 = vmatpush1.msra.mxu0 0.0
    %1907 = vmatprep.subr.mxu0 0.0
    %1908 = vmatpush1.msra.mxu0 0.0
    %1909 = vmatprep.subr.mxu0 0.0
    %1910 = vmatpush1.msra.mxu0 0.0
    %1911 = vmatprep.subr.mxu0 0.0
    %1912 = vmatpush1.msra.mxu0 0.0
    %1913 = vmatprep.subr.mxu0 0.0
    %1914 = vmatpush1.msra.mxu0 0.0
    %1915 = vmatprep.subr.mxu0 0.0
    %1916 = vmatpush1.msra.mxu0 0.0
    %1917 = vmatprep.subr.mxu0 0.0
    %1918 = vmatpush1.msra.mxu0 0.0
    %1919 = vmatprep.subr.mxu0 0.0
    %1920 = vmatpush1.msra.mxu0 0.0
    %1921 = vmatprep.subr.mxu0 0.0
    %1922 = vmatpush1.msra.mxu0 0.0
    %1923 = vmatprep.subr.mxu0 0.0
    %1924 = vmatpush1.msra.mxu0 0.0
    %1925 = vmatprep.subr.mxu0 0.0
    %1926 = vmatpush1.msra.mxu0 0.0
    %1927 = vmatprep.subr.mxu0 0.0
    %1928 = vmatpush1.msra.mxu0 0.0
    %1929 = vmatprep.subr.mxu0 0.0
    %1930 = vmatpush1.msra.mxu0 0.0
    %1931 = vmatprep.subr.mxu0 0.0
    %1932 = vmatpush1.msra.mxu0 0.0
    %1933 = vmatprep.subr.mxu0 0.0
    %1934 = vmatpush1.msra.mxu0 0.0
    %1935 = vmatprep.subr.mxu0 0.0
    %1936 = vmatpush1.msra.mxu0 0.0
    %1937 = vmatprep.subr.mxu0 0.0
    %1938 = vmatpush1.msra.mxu0 0.0
    %1939 = vmatprep.subr.mxu0 0.0
    %1940 = vmatpush1.msra.mxu0 0.0
    %1941 = vmatprep.subr.mxu0 0.0
    %1942 = vmatpush1.msra.mxu0 0.0
    %1943 = vmatprep.subr.mxu0 0.0
    %1944 = vmatpush1.msra.mxu0 0.0
    %1945 = vmatprep.subr.mxu0 0.0
    %1946 = vmatpush1.msra.mxu0 0.0
    %1947 = vmatprep.subr.mxu0 0.0
    %1948 = vmatpush1.msra.mxu0 0.0
    %1949 = vmatprep.mubr.f32.mxu0 0.0
    %1950 = vmatmul.mubr.f32.gmra.mrb[0].mxu0 %v1883
    %v1951 = vpop.f32.mrb[0].mxu0
    %v1952 = vadd.f32 0.0, %v1951
    %v1953 = vpop.f32.mrb[0].mxu0
    %1954 = vdwg.mxu0
    %v1955 = vadd.f32 %v885, %v1952
    %v1956 = vmul.f32 %v1955, 0.5
    %v1957 = vsel %vm49, %v1955, %v1956
    %v1958 = vtanh.pop %v1957
    %v1959 = vadd.f32 %v1958, 1.0
    %v1960 = vmul.f32 %v1959, 0.5
    %v1961 = vsel %vm49, %v1958, %v1960
    %v1962 = vmul.f32 %v1961, %v1873
    %1964 = vrot.lane.b32.xlu0 %v1961, 64
    %v1965 = vpop.permute.xlu0 %1964
    %v1967 = vmul.f32 %v1961, %v1965
    %1969 = vrot.lane.b32.xlu0 %v1967, 32
    %v1970 = vpop.permute.xlu0 %1969
    %v1972 = vadd.f32 %v1962, %v1970
    %v1973 = vtanh.pop %v1972
    %1975 = vrot.lane.b32.xlu0 %v1973, 64
    %v1976 = vpop.permute.xlu0 %1975
    %v1978 = vmul.f32 %v1961, %v1976
    %1980 = vrot.lane.b32.xlu0 %v1978, 32
    %v1981 = vpop.permute.xlu0 %1980
    %v1982 = vsel %vm183, %v1981, 0
    %1984 = vmatprep.subr.mxu0 0.0
    %1985 = vmatpush1.msra.mxu0 %v40
    %1986 = vmatprep.subr.mxu0 0.0
    %1987 = vmatpush1.msra.mxu0 %v41
    %1988 = vmatprep.subr.mxu0 0.0
    %1989 = vmatpush1.msra.mxu0 %v42
    %1990 = vmatprep.subr.mxu0 0.0
    %1991 = vmatpush1.msra.mxu0 %v43
    %1992 = vmatprep.subr.mxu0 0.0
    %1993 = vmatpush1.msra.mxu0 0.0
    %1994 = vmatprep.subr.mxu0 0.0
    %1995 = vmatpush1.msra.mxu0 0.0
    %1996 = vmatprep.subr.mxu0 0.0
    %1997 = vmatpush1.msra.mxu0 0.0
    %1998 = vmatprep.subr.mxu0 0.0
    %1999 = vmatpush1.msra.mxu0 0.0
    %2000 = vmatprep.subr.mxu0 0.0
    %2001 = vmatpush1.msra.mxu0 0.0
    %2002 = vmatprep.subr.mxu0 0.0
    %2003 = vmatpush1.msra.mxu0 0.0
    %2004 = vmatprep.subr.mxu0 0.0
    %2005 = vmatpush1.msra.mxu0 0.0
    %2006 = vmatprep.subr.mxu0 0.0
    %2007 = vmatpush1.msra.mxu0 0.0
    %2008 = vmatprep.subr.mxu0 0.0
    %2009 = vmatpush1.msra.mxu0 0.0
    %2010 = vmatprep.subr.mxu0 0.0
    %2011 = vmatpush1.msra.mxu0 0.0
    %2012 = vmatprep.subr.mxu0 0.0
    %2013 = vmatpush1.msra.mxu0 0.0
    %2014 = vmatprep.subr.mxu0 0.0
    %2015 = vmatpush1.msra.mxu0 0.0
    %2016 = vmatprep.subr.mxu0 0.0
    %2017 = vmatpush1.msra.mxu0 0.0
    %2018 = vmatprep.subr.mxu0 0.0
    %2019 = vmatpush1.msra.mxu0 0.0
    %2020 = vmatprep.subr.mxu0 0.0
    %2021 = vmatpush1.msra.mxu0 0.0
    %2022 = vmatprep.subr.mxu0 0.0
    %2023 = vmatpush1.msra.mxu0 0.0
    %2024 = vmatprep.subr.mxu0 0.0
    %2025 = vmatpush1.msra.mxu0 0.0
    %2026 = vmatprep.subr.mxu0 0.0
    %2027 = vmatpush1.msra.mxu0 0.0
    %2028 = vmatprep.subr.mxu0 0.0
    %2029 = vmatpush1.msra.mxu0 0.0
    %2030 = vmatprep.subr.mxu0 0.0
    %2031 = vmatpush1.msra.mxu0 0.0
    %2032 = vmatprep.subr.mxu0 0.0
    %2033 = vmatpush1.msra.mxu0 0.0
    %2034 = vmatprep.subr.mxu0 0.0
    %2035 = vmatpush1.msra.mxu0 0.0
    %2036 = vmatprep.subr.mxu0 0.0
    %2037 = vmatpush1.msra.mxu0 0.0
    %2038 = vmatprep.subr.mxu0 0.0
    %2039 = vmatpush1.msra.mxu0 0.0
    %2040 = vmatprep.subr.mxu0 0.0
    %2041 = vmatpush1.msra.mxu0 0.0
    %2042 = vmatprep.subr.mxu0 0.0
    %2043 = vmatpush1.msra.mxu0 0.0
    %2044 = vmatprep.subr.mxu0 0.0
    %2045 = vmatpush1.msra.mxu0 0.0
    %2046 = vmatprep.subr.mxu0 0.0
    %2047 = vmatpush1.msra.mxu0 0.0
    %2048 = vmatprep.mubr.f32.mxu0 0.0
    %2049 = vmatmul.mubr.f32.gmra.mrb[0].mxu0 %v1982
    %v2050 = vpop.f32.mrb[0].mxu0
    %v2051 = vadd.f32 0.0, %v2050
    %v2052 = vpop.f32.mrb[0].mxu0
    %2053 = vdwg.mxu0
    %v2054 = vadd.f32 %v1057, %v2051
    %v2055 = vmul.f32 %v2054, 0.5
    %v2056 = vsel %vm49, %v2054, %v2055
    %v2057 = vtanh.pop %v2056
    %v2058 = vadd.f32 %v2057, 1.0
    %v2059 = vmul.f32 %v2058, 0.5
    %v2060 = vsel %vm49, %v2057, %v2059
    %v2061 = vmul.f32 %v2060, %v1972
    %2063 = vrot.lane.b32.xlu0 %v2060, 64
    %v2064 = vpop.permute.xlu0 %2063
    %v2066 = vmul.f32 %v2060, %v2064
    %2068 = vrot.lane.b32.xlu0 %v2066, 32
    %v2069 = vpop.permute.xlu0 %2068
    %v2071 = vadd.f32 %v2061, %v2069
    %v2072 = vtanh.pop %v2071
    %2074 = vrot.lane.b32.xlu0 %v2072, 64
    %v2075 = vpop.permute.xlu0 %2074
    %v2077 = vmul.f32 %v2060, %v2075
    %2079 = vrot.lane.b32.xlu0 %v2077, 32
    %v2080 = vpop.permute.xlu0 %2079
    %v2081 = vsel %vm183, %v2080, 0
    %2083 = vmatprep.subr.mxu0 0.0
    %2084 = vmatpush1.msra.mxu0 %v40
    %2085 = vmatprep.subr.mxu0 0.0
    %2086 = vmatpush1.msra.mxu0 %v41
    %2087 = vmatprep.subr.mxu0 0.0
    %2088 = vmatpush1.msra.mxu0 %v42
    %2089 = vmatprep.subr.mxu0 0.0
    %2090 = vmatpush1.msra.mxu0 %v43
    %2091 = vmatprep.subr.mxu0 0.0
    %2092 = vmatpush1.msra.mxu0 0.0
    %2093 = vmatprep.subr.mxu0 0.0
    %2094 = vmatpush1.msra.mxu0 0.0
    %2095 = vmatprep.subr.mxu0 0.0
    %2096 = vmatpush1.msra.mxu0 0.0
    %2097 = vmatprep.subr.mxu0 0.0
    %2098 = vmatpush1.msra.mxu0 0.0
    %2099 = vmatprep.subr.mxu0 0.0
    %2100 = vmatpush1.msra.mxu0 0.0
    %2101 = vmatprep.subr.mxu0 0.0
    %2102 = vmatpush1.msra.mxu0 0.0
    %2103 = vmatprep.subr.mxu0 0.0
    %2104 = vmatpush1.msra.mxu0 0.0
    %2105 = vmatprep.subr.mxu0 0.0
    %2106 = vmatpush1.msra.mxu0 0.0
    %2107 = vmatprep.subr.mxu0 0.0
    %2108 = vmatpush1.msra.mxu0 0.0
    %2109 = vmatprep.subr.mxu0 0.0
    %2110 = vmatpush1.msra.mxu0 0.0
    %2111 = vmatprep.subr.mxu0 0.0
    %2112 = vmatpush1.msra.mxu0 0.0
    %2113 = vmatprep.subr.mxu0 0.0
    %2114 = vmatpush1.msra.mxu0 0.0
    %2115 = vmatprep.subr.mxu0 0.0
    %2116 = vmatpush1.msra.mxu0 0.0
    %2117 = vmatprep.subr.mxu0 0.0
    %2118 = vmatpush1.msra.mxu0 0.0
    %2119 = vmatprep.subr.mxu0 0.0
    %2120 = vmatpush1.msra.mxu0 0.0
    %2121 = vmatprep.subr.mxu0 0.0
    %2122 = vmatpush1.msra.mxu0 0.0
    %2123 = vmatprep.subr.mxu0 0.0
    %2124 = vmatpush1.msra.mxu0 0.0
    %2125 = vmatprep.subr.mxu0 0.0
    %2126 = vmatpush1.msra.mxu0 0.0
    %2127 = vmatprep.subr.mxu0 0.0
    %2128 = vmatpush1.msra.mxu0 0.0
    %2129 = vmatprep.subr.mxu0 0.0
    %2130 = vmatpush1.msra.mxu0 0.0
    %2131 = vmatprep.subr.mxu0 0.0
    %2132 = vmatpush1.msra.mxu0 0.0
    %2133 = vmatprep.subr.mxu0 0.0
    %2134 = vmatpush1.msra.mxu0 0.0
    %2135 = vmatprep.subr.mxu0 0.0
    %2136 = vmatpush1.msra.mxu0 0.0
    %2137 = vmatprep.subr.mxu0 0.0
    %2138 = vmatpush1.msra.mxu0 0.0
    %2139 = vmatprep.subr.mxu0 0.0
    %2140 = vmatpush1.msra.mxu0 0.0
    %2141 = vmatprep.subr.mxu0 0.0
    %2142 = vmatpush1.msra.mxu0 0.0
    %2143 = vmatprep.subr.mxu0 0.0
    %2144 = vmatpush1.msra.mxu0 0.0
    %2145 = vmatprep.subr.mxu0 0.0
    %2146 = vmatpush1.msra.mxu0 0.0
    %2147 = vmatprep.mubr.f32.mxu0 0.0
    %2148 = vmatmul.mubr.f32.gmra.mrb[0].mxu0 %v2081
    %v2149 = vpop.f32.mrb[0].mxu0
    %v2150 = vadd.f32 0.0, %v2149
    %v2151 = vpop.f32.mrb[0].mxu0
    %2152 = vdwg.mxu0
    %v2153 = vadd.f32 %v1233, %v2150
    %v2154 = vmul.f32 %v2153, 0.5
    %v2155 = vsel %vm49, %v2153, %v2154
    %v2156 = vtanh.pop %v2155
    %v2157 = vadd.f32 %v2156, 1.0
    %v2158 = vmul.f32 %v2157, 0.5
    %v2159 = vsel %vm49, %v2156, %v2158
    %v2160 = vmul.f32 %v2159, %v2071
    %2162 = vrot.lane.b32.xlu0 %v2159, 64
    %v2163 = vpop.permute.xlu0 %2162
    %v2165 = vmul.f32 %v2159, %v2163
    %2167 = vrot.lane.b32.xlu0 %v2165, 32
    %v2168 = vpop.permute.xlu0 %2167
    %v2170 = vadd.f32 %v2160, %v2168
    %v2171 = vtanh.pop %v2170
    %2173 = vrot.lane.b32.xlu0 %v2171, 64
    %v2174 = vpop.permute.xlu0 %2173
    %v2176 = vmul.f32 %v2159, %v2174
    %2178 = vrot.lane.b32.xlu0 %v2176, 32
    %v2179 = vpop.permute.xlu0 %2178
    %v2180 = vsel %vm183, %v2179, 0
    %2182 = vmatprep.subr.mxu0 0.0
    %2183 = vmatpush1.msra.mxu0 %v40
    %2184 = vmatprep.subr.mxu0 0.0
    %2185 = vmatpush1.msra.mxu0 %v41
    %2186 = vmatprep.subr.mxu0 0.0
    %2187 = vmatpush1.msra.mxu0 %v42
    %2188 = vmatprep.subr.mxu0 0.0
    %2189 = vmatpush1.msra.mxu0 %v43
    %2190 = vmatprep.subr.mxu0 0.0
    %2191 = vmatpush1.msra.mxu0 0.0
    %2192 = vmatprep.subr.mxu0 0.0
    %2193 = vmatpush1.msra.mxu0 0.0
    %2194 = vmatprep.subr.mxu0 0.0
    %2195 = vmatpush1.msra.mxu0 0.0
    %2196 = vmatprep.subr.mxu0 0.0
    %2197 = vmatpush1.msra.mxu0 0.0
    %2198 = vmatprep.subr.mxu0 0.0
    %2199 = vmatpush1.msra.mxu0 0.0
    %2200 = vmatprep.subr.mxu0 0.0
    %2201 = vmatpush1.msra.mxu0 0.0
    %2202 = vmatprep.subr.mxu0 0.0
    %2203 = vmatpush1.msra.mxu0 0.0
    %2204 = vmatprep.subr.mxu0 0.0
    %2205 = vmatpush1.msra.mxu0 0.0
    %2206 = vmatprep.subr.mxu0 0.0
    %2207 = vmatpush1.msra.mxu0 0.0
    %2208 = vmatprep.subr.mxu0 0.0
    %2209 = vmatpush1.msra.mxu0 0.0
    %2210 = vmatprep.subr.mxu0 0.0
    %2211 = vmatpush1.msra.mxu0 0.0
    %2212 = vmatprep.subr.mxu0 0.0
    %2213 = vmatpush1.msra.mxu0 0.0
    %2214 = vmatprep.subr.mxu0 0.0
    %2215 = vmatpush1.msra.mxu0 0.0
    %2216 = vmatprep.subr.mxu0 0.0
    %2217 = vmatpush1.msra.mxu0 0.0
    %2218 = vmatprep.subr.mxu0 0.0
    %2219 = vmatpush1.msra.mxu0 0.0
    %2220 = vmatprep.subr.mxu0 0.0
    %2221 = vmatpush1.msra.mxu0 0.0
    %2222 = vmatprep.subr.mxu0 0.0
    %2223 = vmatpush1.msra.mxu0 0.0
    %2224 = vmatprep.subr.mxu0 0.0
    %2225 = vmatpush1.msra.mxu0 0.0
    %2226 = vmatprep.subr.mxu0 0.0
    %2227 = vmatpush1.msra.mxu0 0.0
    %2228 = vmatprep.subr.mxu0 0.0
    %2229 = vmatpush1.msra.mxu0 0.0
    %2230 = vmatprep.subr.mxu0 0.0
    %2231 = vmatpush1.msra.mxu0 0.0
    %2232 = vmatprep.subr.mxu0 0.0
    %2233 = vmatpush1.msra.mxu0 0.0
    %2234 = vmatprep.subr.mxu0 0.0
    %2235 = vmatpush1.msra.mxu0 0.0
    %2236 = vmatprep.subr.mxu0 0.0
    %2237 = vmatpush1.msra.mxu0 0.0
    %2238 = vmatprep.subr.mxu0 0.0
    %2239 = vmatpush1.msra.mxu0 0.0
    %2240 = vmatprep.subr.mxu0 0.0
    %2241 = vmatpush1.msra.mxu0 0.0
    %2242 = vmatprep.subr.mxu0 0.0
    %2243 = vmatpush1.msra.mxu0 0.0
    %2244 = vmatprep.subr.mxu0 0.0
    %2245 = vmatpush1.msra.mxu0 0.0
    %2246 = vmatprep.mubr.f32.mxu0 0.0
    %2247 = vmatmul.mubr.f32.gmra.mrb[0].mxu0 %v2180
    %v2248 = vpop.f32.mrb[0].mxu0
    %v2249 = vadd.f32 0.0, %v2248
    %v2250 = vpop.f32.mrb[0].mxu0
    %2251 = vdwg.mxu0
    %v2252 = vadd.f32 %v1409, %v2249
    %v2253 = vmul.f32 %v2252, 0.5
    %v2254 = vsel %vm49, %v2252, %v2253
    %v2255 = vtanh.pop %v2254
    %v2256 = vadd.f32 %v2255, 1.0
    %v2257 = vmul.f32 %v2256, 0.5
    %v2258 = vsel %vm49, %v2255, %v2257
    %v2259 = vmul.f32 %v2258, %v2170
    %2261 = vrot.lane.b32.xlu0 %v2258, 64
    %v2262 = vpop.permute.xlu0 %2261
    %v2264 = vmul.f32 %v2258, %v2262
    %2266 = vrot.lane.b32.xlu0 %v2264, 32
    %v2267 = vpop.permute.xlu0 %2266
    %v2269 = vadd.f32 %v2259, %v2267
    %v2270 = vtanh.pop %v2269
    %2272 = vrot.lane.b32.xlu0 %v2270, 64
    %v2273 = vpop.permute.xlu0 %2272
    %v2275 = vmul.f32 %v2258, %v2273
    %2277 = vrot.lane.b32.xlu0 %v2275, 32
    %v2278 = vpop.permute.xlu0 %2277
    %v2279 = vsel %vm183, %v2278, 0
    %2281 = vmatprep.subr.mxu0 0.0
    %2282 = vmatpush1.msra.mxu0 %v40
    %2283 = vmatprep.subr.mxu0 0.0
    %2284 = vmatpush1.msra.mxu0 %v41
    %2285 = vmatprep.subr.mxu0 0.0
    %2286 = vmatpush1.msra.mxu0 %v42
    %2287 = vmatprep.subr.mxu0 0.0
    %2288 = vmatpush1.msra.mxu0 %v43
    %2289 = vmatprep.subr.mxu0 0.0
    %2290 = vmatpush1.msra.mxu0 0.0
    %2291 = vmatprep.subr.mxu0 0.0
    %2292 = vmatpush1.msra.mxu0 0.0
    %2293 = vmatprep.subr.mxu0 0.0
    %2294 = vmatpush1.msra.mxu0 0.0
    %2295 = vmatprep.subr.mxu0 0.0
    %2296 = vmatpush1.msra.mxu0 0.0
    %2297 = vmatprep.subr.mxu0 0.0
    %2298 = vmatpush1.msra.mxu0 0.0
    %2299 = vmatprep.subr.mxu0 0.0
    %2300 = vmatpush1.msra.mxu0 0.0
    %2301 = vmatprep.subr.mxu0 0.0
    %2302 = vmatpush1.msra.mxu0 0.0
    %2303 = vmatprep.subr.mxu0 0.0
    %2304 = vmatpush1.msra.mxu0 0.0
    %2305 = vmatprep.subr.mxu0 0.0
    %2306 = vmatpush1.msra.mxu0 0.0
    %2307 = vmatprep.subr.mxu0 0.0
    %2308 = vmatpush1.msra.mxu0 0.0
    %2309 = vmatprep.subr.mxu0 0.0
    %2310 = vmatpush1.msra.mxu0 0.0
    %2311 = vmatprep.subr.mxu0 0.0
    %2312 = vmatpush1.msra.mxu0 0.0
    %2313 = vmatprep.subr.mxu0 0.0
    %2314 = vmatpush1.msra.mxu0 0.0
    %2315 = vmatprep.subr.mxu0 0.0
    %2316 = vmatpush1.msra.mxu0 0.0
    %2317 = vmatprep.subr.mxu0 0.0
    %2318 = vmatpush1.msra.mxu0 0.0
    %2319 = vmatprep.subr.mxu0 0.0
    %2320 = vmatpush1.msra.mxu0 0.0
    %2321 = vmatprep.subr.mxu0 0.0
    %2322 = vmatpush1.msra.mxu0 0.0
    %2323 = vmatprep.subr.mxu0 0.0
    %2324 = vmatpush1.msra.mxu0 0.0
    %2325 = vmatprep.subr.mxu0 0.0
    %2326 = vmatpush1.msra.mxu0 0.0
    %2327 = vmatprep.subr.mxu0 0.0
    %2328 = vmatpush1.msra.mxu0 0.0
    %2329 = vmatprep.subr.mxu0 0.0
    %2330 = vmatpush1.msra.mxu0 0.0
    %2331 = vmatprep.subr.mxu0 0.0
    %2332 = vmatpush1.msra.mxu0 0.0
    %2333 = vmatprep.subr.mxu0 0.0
    %2334 = vmatpush1.msra.mxu0 0.0
    %2335 = vmatprep.subr.mxu0 0.0
    %2336 = vmatpush1.msra.mxu0 0.0
    %2337 = vmatprep.subr.mxu0 0.0
    %2338 = vmatpush1.msra.mxu0 0.0
    %2339 = vmatprep.subr.mxu0 0.0
    %2340 = vmatpush1.msra.mxu0 0.0
    %2341 = vmatprep.subr.mxu0 0.0
    %2342 = vmatpush1.msra.mxu0 0.0
    %2343 = vmatprep.subr.mxu0 0.0
    %2344 = vmatpush1.msra.mxu0 0.0
    %2345 = vmatprep.mubr.f32.mxu0 0.0
    %2346 = vmatmul.mubr.f32.gmra.mrb[0].mxu0 %v2279
    %v2347 = vpop.f32.mrb[0].mxu0
    %v2348 = vadd.f32 0.0, %v2347
    %v2349 = vpop.f32.mrb[0].mxu0
    %2350 = vdwg.mxu0
    %v2351 = vadd.f32 %v1585, %v2348
    %v2352 = vmul.f32 %v2351, 0.5
    %v2353 = vsel %vm49, %v2351, %v2352
    %v2354 = vtanh.pop %v2353
    %v2355 = vadd.f32 %v2354, 1.0
    %v2356 = vmul.f32 %v2355, 0.5
    %v2357 = vsel %vm49, %v2354, %v2356
    %v2358 = vmul.f32 %v2357, %v2269
    %2360 = vrot.lane.b32.xlu0 %v2357, 64
    %v2361 = vpop.permute.xlu0 %2360
    %v2363 = vmul.f32 %v2357, %v2361
    %2365 = vrot.lane.b32.xlu0 %v2363, 32
    %v2366 = vpop.permute.xlu0 %2365
    %v2368 = vadd.f32 %v2358, %v2366
    %v2369 = vtanh.pop %v2368
    %2371 = vrot.lane.b32.xlu0 %v2369, 64
    %v2372 = vpop.permute.xlu0 %2371
    %v2374 = vmul.f32 %v2357, %v2372
    %v2375 = vld [vmem:[%s2] sm:$0xff]
    %v2376 = vld [vmem:[%s2 + $0x8] sm:$0xff]
    %v2377 = vld [vmem:[%s2 + $0x10] sm:$0xff]
    %v2378 = vld [vmem:[%s2 + $0x18] sm:$0xff]
    %v2379 = vld [vmem:[%s2 + $0x20] sm:$0x1]
    %v2380 = vlaneseq
    %v2381 = vshrl.u32 %v2380, 7
    %v2382 = vsub.s32 0, %v2381
    %v2383 = vrot.slane %v2379, %v2382
    %2385 = vrot.lane.b32.xlu0 %v2374, 32
    %v2386 = vpop.permute.xlu0 %2385
    %v2387 = vsel %vm183, %v2386, 0
    %2389 = vmatprep.subr.mxu0 0.0
    %2390 = vmatpush1.msra.mxu0 %v2375
    %2391 = vmatprep.subr.mxu0 0.0
    %2392 = vmatpush1.msra.mxu0 %v2376
    %2393 = vmatprep.subr.mxu0 0.0
    %2394 = vmatpush1.msra.mxu0 %v2377
    %2395 = vmatprep.subr.mxu0 0.0
    %2396 = vmatpush1.msra.mxu0 %v2378
    %2397 = vmatprep.subr.mxu0 0.0
    %2398 = vmatpush1.msra.mxu0 0.0
    %2399 = vmatprep.subr.mxu0 0.0
    %2400 = vmatpush1.msra.mxu0 0.0
    %2401 = vmatprep.subr.mxu0 0.0
    %2402 = vmatpush1.msra.mxu0 0.0
    %2403 = vmatprep.subr.mxu0 0.0
    %2404 = vmatpush1.msra.mxu0 0.0
    %2405 = vmatprep.subr.mxu0 0.0
    %2406 = vmatpush1.msra.mxu0 0.0
    %2407 = vmatprep.subr.mxu0 0.0
    %2408 = vmatpush1.msra.mxu0 0.0
    %2409 = vmatprep.subr.mxu0 0.0
    %2410 = vmatpush1.msra.mxu0 0.0
    %2411 = vmatprep.subr.mxu0 0.0
    %2412 = vmatpush1.msra.mxu0 0.0
    %2413 = vmatprep.subr.mxu0 0.0
    %2414 = vmatpush1.msra.mxu0 0.0
    %2415 = vmatprep.subr.mxu0 0.0
    %2416 = vmatpush1.msra.mxu0 0.0
    %2417 = vmatprep.subr.mxu0 0.0
    %2418 = vmatpush1.msra.mxu0 0.0
    %2419 = vmatprep.subr.mxu0 0.0
    %2420 = vmatpush1.msra.mxu0 0.0
    %2421 = vmatprep.subr.mxu0 0.0
    %2422 = vmatpush1.msra.mxu0 0.0
    %2423 = vmatprep.subr.mxu0 0.0
    %2424 = vmatpush1.msra.mxu0 0.0
    %2425 = vmatprep.subr.mxu0 0.0
    %2426 = vmatpush1.msra.mxu0 0.0
    %2427 = vmatprep.subr.mxu0 0.0
    %2428 = vmatpush1.msra.mxu0 0.0
    %2429 = vmatprep.subr.mxu0 0.0
    %2430 = vmatpush1.msra.mxu0 0.0
    %2431 = vmatprep.subr.mxu0 0.0
    %2432 = vmatpush1.msra.mxu0 0.0
    %2433 = vmatprep.subr.mxu0 0.0
    %2434 = vmatpush1.msra.mxu0 0.0
    %2435 = vmatprep.subr.mxu0 0.0
    %2436 = vmatpush1.msra.mxu0 0.0
    %2437 = vmatprep.subr.mxu0 0.0
    %2438 = vmatpush1.msra.mxu0 0.0
    %2439 = vmatprep.subr.mxu0 0.0
    %2440 = vmatpush1.msra.mxu0 0.0
    %2441 = vmatprep.subr.mxu0 0.0
    %2442 = vmatpush1.msra.mxu0 0.0
    %2443 = vmatprep.subr.mxu0 0.0
    %2444 = vmatpush1.msra.mxu0 0.0
    %2445 = vmatprep.subr.mxu0 0.0
    %2446 = vmatpush1.msra.mxu0 0.0
    %2447 = vmatprep.subr.mxu0 0.0
    %2448 = vmatpush1.msra.mxu0 0.0
    %2449 = vmatprep.subr.mxu0 0.0
    %2450 = vmatpush1.msra.mxu0 0.0
    %2451 = vmatprep.subr.mxu0 0.0
    %2452 = vmatpush1.msra.mxu0 0.0
    %2453 = vmatprep.mubr.f32.mxu0 0.0
    %2454 = vmatmul.mubr.f32.gmra.mrb[0].mxu0 %v2387
    %v2455 = vpop.f32.mrb[0].mxu0
    %v2456 = vadd.f32 %v2383, %v2455
    %v2457 = vpop.f32.mrb[0].mxu0
    %2458 = vdwg.mxu0
    %vm2459 = vcmask 25600
    %2460 = vst.msk [vmem:[#allocation5] sm:$0x3] %vm2459, %v2456
    // Predicated region
    $region18: #{lstm_model_forward.1} parent=1 // pred_check
      _
    $region19: #{lstm_model_forward.1} parent=1 // pred_check_branch
      %2462 = sbr.rel (0) target = $region21
    $region20: #{lstm_model_forward.1} parent=1 // pred_region
      %s2464 = ssub.s32 32, 32
      %2465 = vsyncadd [#allocation4], %s2464
      %s2467 = sshll.u32 [#allocation5], 4
      %s2468 = int_to_ptr.vmem [resolvable:$true] %s2467
      %2470 = dma.vmem_to_hbm [thread:$0]  %s2468, 32, %s3, [#allocation4]
    $region21: #{lstm_model_forward.1} parent=1 // pred_fallthru
      _
    // Predicated region
    $region22: #{lstm_model_forward.1} parent=1 // pred_check
      _
    $region23: #{lstm_model_forward.1} parent=1 // pred_check_branch
      %2472 = sbr.rel (0) target = $region25
    $region24: #{lstm_model_forward.1} parent=1 // pred_region
      %2473 = dma.done [#allocation4], 32
    $region25: #{lstm_model_forward.1} parent=1 // pred_fallthru
      _
    %2474 = vsyncpa [#allocation3], 1
    %2475 = vsyncpa [#allocation4], 1

</llo_original>
